<compile_context>
chip_gen: v7x
topology: tpu7x:2x2x1
jax: 0.10.0
libtpu: 0.0.40
codegen_flags: <defaults>
</compile_context>

<pallas_src>
import jax
import jax.numpy as jnp
from jax.experimental import pallas as pl
from jax.experimental.pallas import tpu as pltpu


# ------------------------------------------------------------- band weight --
def build_banded_weight(w_dhwio, H, W):
    """Fold the (kh, kw) taps of a KxKxK conv into a banded matrix per kd.

    Returns band[kd] of shape ((H+K-1)*(W+K-1)*C, H*W*C) with
      band[kd][(h+kh)*(W+K-1)*C + (w+kw)*C + ci, h*W*C + w*C + co]
        = w_dhwio[kd, kh, kw, ci, co]
    and zeros elsewhere, so a single matmul applies all 25 in-plane taps.
    """
    K = w_dhwio.shape[0]
    C = w_dhwio.shape[3]
    Hp, Wp = H + K - 1, W + K - 1

    hp = jnp.arange(Hp)
    wp = jnp.arange(Wp)
    ho = jnp.arange(H)
    wo = jnp.arange(W)
    kh = hp[:, None, None, None] - ho[None, None, :, None]     # (Hp,1,H,1)
    kw = wp[None, :, None, None] - wo[None, None, None, :]     # (1,Wp,1,W)
    valid = (kh >= 0) & (kh < K) & (kw >= 0) & (kw < K)        # (Hp,Wp,H,W)
    khc = jnp.broadcast_to(jnp.clip(kh, 0, K - 1), (Hp, Wp, H, W))
    kwc = jnp.broadcast_to(jnp.clip(kw, 0, K - 1), (Hp, Wp, H, W))

    band = w_dhwio[:, khc, kwc, :, :]                          # (K,Hp,Wp,H,W,C,C)
    band = band * valid[None, :, :, :, :, None, None].astype(band.dtype)
    band = jnp.transpose(band, (0, 1, 2, 5, 3, 4, 6))          # (K,Hp,Wp,Ci,H,W,Co)
    return band.reshape(K, Hp * Wp * C, H * W * C).astype(jnp.float32)


# ---------------------------------------------------------------- kernel 1 --
def conv_stats_kernel(xp_ref, wband_ref, y_ref, stats_ref):
    # xp_ref    : (1, D+4, (H+4)*(W+4)*C)   padded input, one batch element
    # wband_ref : (5, (H+4)*(W+4)*C, H*W*C) banded conv weights
    # y_ref     : (1, D, H*W*C)             conv output (lane-dense)
    # stats_ref : (1, 2, H*W*C)             per-step partial [sum, sum-of-squares]
    K = wband_ref.shape[0]
    D = y_ref.shape[1]
    Pout = y_ref.shape[2]

    acc = jnp.zeros((D, Pout), jnp.float32)     # stays in vregs (2 for test case)
    for kd in range(K):                         # 5 taps, each one MXU matmul
        acc = acc + jnp.dot(xp_ref[0, kd:kd + D, :], wband_ref[kd],
                            preferred_element_type=jnp.float32)

    y_ref[0] = acc
    # Per-step partial statistics, single lane-dense (2, Pout) store;
    # reduced to per-channel in the wrapper.
    stats_ref[0] = jnp.concatenate(
        [jnp.sum(acc, axis=0, keepdims=True),
         jnp.sum(acc * acc, axis=0, keepdims=True)], axis=0)


# ---------------------------------------------------------------- kernel 2 --
def bn_prelu_kernel(y_ref, p_ref, o_ref):
    # y_ref : (TR, H*W*C) lane-dense slab
    # p_ref : (3, H*W*C)  rows = [scale, shift, alpha] tiled to lane layout
    z = y_ref[...] * p_ref[0:1, :] + p_ref[1:2, :]
    o_ref[...] = jnp.where(z >= 0, z, p_ref[2:3, :] * z)


# ----------------------------------------------------------------- wrapper --
def luconv_forward(x_ncdhw, w_dhwio, bias, gamma, beta, alpha, eps=1e-5):
    del bias  # Conv bias cancels exactly under train-mode batch norm.
    N, C, D, H, W = x_ncdhw.shape
    K = w_dhwio.shape[0]
    P = K // 2
    Hp, Wp = H + 2 * P, W + 2 * P
    Pin = Hp * Wp * C
    Pout = H * W * C

    # NCDHW -> NDHWC, zero-pad spatial dims, fold (h, w, c) onto the lane axis.
    x = jnp.transpose(x_ncdhw, (0, 2, 3, 4, 1)).astype(jnp.float32)
    xp = jnp.pad(x, ((0, 0), (P, P), (P, P), (P, P), (0, 0)))
    xp = xp.reshape(N, D + 2 * P, Pin)

    wband = build_banded_weight(w_dhwio, H, W)           # (K, Pin, Pout)

    y_flat, stats = pl.pallas_call(
        conv_stats_kernel,
        out_shape=(jax.ShapeDtypeStruct((N, D, Pout), jnp.float32),
                   jax.ShapeDtypeStruct((N, 2, Pout), jnp.float32)),
        grid_spec=pltpu.PrefetchScalarGridSpec(
            num_scalar_prefetch=0,
            grid=(N,),
            in_specs=[
                pl.BlockSpec((1, D + 2 * P, Pin), lambda n: (n, 0, 0)),
                # Constant block index -> weight DMA'd once, reused every step.
                pl.BlockSpec((K, Pin, Pout), lambda n: (0, 0, 0)),
            ],
            out_specs=[
                pl.BlockSpec((1, D, Pout), lambda n: (n, 0, 0)),
                pl.BlockSpec((1, 2, Pout), lambda n: (n, 0, 0)),
            ]),
        compiler_params=pltpu.CompilerParams(
            dimension_semantics=("parallel",)),   # no revisit -> megacore OK
    )(xp, wband)

    # Batch-norm batch statistics (F.batch_norm training=True, biased var).
    # Running-stat EMA updates are training state only and not returned.
    cnt = jnp.float32(N * D * H * W)
    tot = stats.sum(axis=0).reshape(2, H * W, C).sum(axis=1)   # (2, C)
    mean = tot[0] / cnt
    var = tot[1] / cnt - mean * mean
    scale = gamma / jnp.sqrt(var + eps)
    shift = beta - mean * scale
    params = jnp.stack([jnp.tile(scale, H * W),
                        jnp.tile(shift, H * W),
                        jnp.tile(alpha, H * W)], axis=0)       # (3, Pout)

    # BN + PReLU over a flattened lane-dense 2D view with large blocks.
    R = N * D
    TR = R
    if R > 512:
        for cand in (512, 256, 128, 64, 32, 16, 8):
            if R % cand == 0:
                TR = cand
                break
    y2 = y_flat.reshape(R, Pout)
    out2 = pl.pallas_call(
        bn_prelu_kernel,
        out_shape=jax.ShapeDtypeStruct((R, Pout), jnp.float32),
        grid_spec=pltpu.PrefetchScalarGridSpec(
            num_scalar_prefetch=0,
            grid=(R // TR,),
            in_specs=[
                pl.BlockSpec((TR, Pout), lambda r: (r, 0)),
                pl.BlockSpec((3, Pout), lambda r: (0, 0)),
            ],
            out_specs=pl.BlockSpec((TR, Pout), lambda r: (r, 0))),
        compiler_params=pltpu.CompilerParams(
            dimension_semantics=("parallel",)),
    )(y2, params)

    out = out2.reshape(N, D, H, W, C)
    return jnp.transpose(out, (0, 4, 1, 2, 3))                 # -> NCDHW


# --------------------------------------------------------------- reference --
def reference(x_ncdhw, w_dhwio, bias, gamma, beta, alpha, eps=1e-5):
    x = jnp.transpose(x_ncdhw, (0, 2, 3, 4, 1))
    y = jax.lax.conv_general_dilated(
        x, w_dhwio, window_strides=(1, 1, 1),
        padding=((2, 2), (2, 2), (2, 2)),
        dimension_numbers=("NDHWC", "DHWIO", "NDHWC"),
        precision=jax.lax.Precision.HIGHEST) + bias
    mean = jnp.mean(y, axis=(0, 1, 2, 3))
    var = jnp.mean((y - mean) ** 2, axis=(0, 1, 2, 3))
    z = (y - mean) / jnp.sqrt(var + eps) * gamma + beta
    out = jnp.where(z >= 0, z, alpha * z)
    return jnp.transpose(out, (0, 4, 1, 2, 3))


if __name__ == "__main__":
    key = jax.random.PRNGKey(0)
    kx, kw, kb, kg, kbe = jax.random.split(key, 5)

    N, C, D, H, W = 2, 4, 8, 8, 8
    x = jax.random.normal(kx, (N, C, D, H, W), jnp.float32)

    # Deterministic synthetic parameters (shapes per nn.Conv3d / BN / PReLU).
    fan_in = C * 5 * 5 * 5
    bound = 1.0 / (fan_in ** 0.5)
    w = jax.random.uniform(kw, (5, 5, 5, C, C), jnp.float32, -bound, bound)
    b = jax.random.uniform(kb, (C,), jnp.float32, -bound, bound)
    gamma = 1.0 + 0.1 * jax.random.normal(kg, (C,), jnp.float32)
    beta = 0.1 * jax.random.normal(kbe, (C,), jnp.float32)
    alpha = jnp.full((C,), 0.25, jnp.float32)   # PReLU default init

    fwd = jax.jit(luconv_forward)
    out = jax.block_until_ready(fwd(x, w, b, gamma, beta, alpha))

    ref = reference(x, w, b, gamma, beta, alpha)
    assert out.shape == (N, C, D, H, W)
    max_err = float(jnp.max(jnp.abs(out - ref)))
    assert max_err < 2e-2, max_err
    print("KERNEL_OK")
</pallas_src>

<mosaic_0001>
module attributes {stable_mosaic.version = 11 : i64} {
  func.func @conv_stats_kernel(%arg0: i32, %arg1: memref<1x12x576xf32, #tpu.memory_space<vmem>>, %arg2: memref<5x576x256xf32, #tpu.memory_space<vmem>>, %arg3: memref<1x8x256xf32, #tpu.memory_space<vmem>>, %arg4: memref<1x2x256xf32, #tpu.memory_space<vmem>>) attributes {dimension_semantics = [#tpu.dimension_semantics<parallel>], iteration_bounds = array<i64: 2>, scalar_prefetch = 0 : i64, scratch_operands = 0 : i64, tpu.core_type = #tpu.core_type<tc>, window_params = [{transform_indices = @transform_0, window_bounds = array<i64: 1, 12, 576>}, {pipeline_mode = #tpu.pipeline_mode<synchronous>, transform_indices = @transform_1, window_bounds = array<i64: 5, 576, 256>}, {transform_indices = @transform_2, window_bounds = array<i64: 1, 8, 256>}, {transform_indices = @transform_3, window_bounds = array<i64: 1, 2, 256>}]} {
    %cst = arith.constant 0.000000e+00 : f32
    %0 = vector.broadcast %cst : f32 to vector<8x256xf32>
    %c0 = arith.constant 0 : index
    %c0_0 = arith.constant 0 : index
    %c0_1 = arith.constant 0 : index
    %1 = vector.load %arg1[%c0, %c0_0, %c0_1] : memref<1x12x576xf32, #tpu.memory_space<vmem>>, vector<1x8x576xf32>
    %2 = vector.shape_cast %1 : vector<1x8x576xf32> to vector<8x576xf32>
    %c0_2 = arith.constant 0 : index
    %c0_3 = arith.constant 0 : index
    %c0_4 = arith.constant 0 : index
    %3 = vector.load %arg2[%c0_2, %c0_3, %c0_4] : memref<5x576x256xf32, #tpu.memory_space<vmem>>, vector<1x576x256xf32>
    %4 = vector.shape_cast %3 : vector<1x576x256xf32> to vector<576x256xf32>
    %cst_5 = arith.constant dense<0.000000e+00> : vector<8x256xf32>
    %5 = tpu.matmul %2, %4, %cst_5 {dimension_numbers = #tpu.dot_dimension_numbers<[1], [0], [0], [1], [0, 0, 1, 1], [], []>} : vector<8x576xf32>, vector<576x256xf32>, vector<8x256xf32> -> vector<8x256xf32>
    %6 = arith.addf %0, %5 : vector<8x256xf32>
    %c0_6 = arith.constant 0 : index
    %c1 = arith.constant 1 : index
    %c0_7 = arith.constant 0 : index
    %7 = vector.load %arg1[%c0_6, %c1, %c0_7] : memref<1x12x576xf32, #tpu.memory_space<vmem>>, vector<1x8x576xf32>
    %8 = vector.shape_cast %7 : vector<1x8x576xf32> to vector<8x576xf32>
    %c1_8 = arith.constant 1 : index
    %c0_9 = arith.constant 0 : index
    %c0_10 = arith.constant 0 : index
    %9 = vector.load %arg2[%c1_8, %c0_9, %c0_10] : memref<5x576x256xf32, #tpu.memory_space<vmem>>, vector<1x576x256xf32>
    %10 = vector.shape_cast %9 : vector<1x576x256xf32> to vector<576x256xf32>
    %cst_11 = arith.constant dense<0.000000e+00> : vector<8x256xf32>
    %11 = tpu.matmul %8, %10, %cst_11 {dimension_numbers = #tpu.dot_dimension_numbers<[1], [0], [0], [1], [0, 0, 1, 1], [], []>} : vector<8x576xf32>, vector<576x256xf32>, vector<8x256xf32> -> vector<8x256xf32>
    %12 = arith.addf %6, %11 : vector<8x256xf32>
    %c0_12 = arith.constant 0 : index
    %c2 = arith.constant 2 : index
    %c0_13 = arith.constant 0 : index
    %13 = vector.load %arg1[%c0_12, %c2, %c0_13] : memref<1x12x576xf32, #tpu.memory_space<vmem>>, vector<1x8x576xf32>
    %14 = vector.shape_cast %13 : vector<1x8x576xf32> to vector<8x576xf32>
    %c2_14 = arith.constant 2 : index
    %c0_15 = arith.constant 0 : index
    %c0_16 = arith.constant 0 : index
    %15 = vector.load %arg2[%c2_14, %c0_15, %c0_16] : memref<5x576x256xf32, #tpu.memory_space<vmem>>, vector<1x576x256xf32>
    %16 = vector.shape_cast %15 : vector<1x576x256xf32> to vector<576x256xf32>
    %cst_17 = arith.constant dense<0.000000e+00> : vector<8x256xf32>
    %17 = tpu.matmul %14, %16, %cst_17 {dimension_numbers = #tpu.dot_dimension_numbers<[1], [0], [0], [1], [0, 0, 1, 1], [], []>} : vector<8x576xf32>, vector<576x256xf32>, vector<8x256xf32> -> vector<8x256xf32>
    %18 = arith.addf %12, %17 : vector<8x256xf32>
    %c0_18 = arith.constant 0 : index
    %c3 = arith.constant 3 : index
    %c0_19 = arith.constant 0 : index
    %19 = vector.load %arg1[%c0_18, %c3, %c0_19] : memref<1x12x576xf32, #tpu.memory_space<vmem>>, vector<1x8x576xf32>
    %20 = vector.shape_cast %19 : vector<1x8x576xf32> to vector<8x576xf32>
    %c3_20 = arith.constant 3 : index
    %c0_21 = arith.constant 0 : index
    %c0_22 = arith.constant 0 : index
    %21 = vector.load %arg2[%c3_20, %c0_21, %c0_22] : memref<5x576x256xf32, #tpu.memory_space<vmem>>, vector<1x576x256xf32>
    %22 = vector.shape_cast %21 : vector<1x576x256xf32> to vector<576x256xf32>
    %cst_23 = arith.constant dense<0.000000e+00> : vector<8x256xf32>
    %23 = tpu.matmul %20, %22, %cst_23 {dimension_numbers = #tpu.dot_dimension_numbers<[1], [0], [0], [1], [0, 0, 1, 1], [], []>} : vector<8x576xf32>, vector<576x256xf32>, vector<8x256xf32> -> vector<8x256xf32>
    %24 = arith.addf %18, %23 : vector<8x256xf32>
    %c0_24 = arith.constant 0 : index
    %c4 = arith.constant 4 : index
    %c0_25 = arith.constant 0 : index
    %25 = vector.load %arg1[%c0_24, %c4, %c0_25] : memref<1x12x576xf32, #tpu.memory_space<vmem>>, vector<1x8x576xf32>
    %26 = vector.shape_cast %25 : vector<1x8x576xf32> to vector<8x576xf32>
    %c4_26 = arith.constant 4 : index
    %c0_27 = arith.constant 0 : index
    %c0_28 = arith.constant 0 : index
    %27 = vector.load %arg2[%c4_26, %c0_27, %c0_28] : memref<5x576x256xf32, #tpu.memory_space<vmem>>, vector<1x576x256xf32>
    %28 = vector.shape_cast %27 : vector<1x576x256xf32> to vector<576x256xf32>
    %cst_29 = arith.constant dense<0.000000e+00> : vector<8x256xf32>
    %29 = tpu.matmul %26, %28, %cst_29 {dimension_numbers = #tpu.dot_dimension_numbers<[1], [0], [0], [1], [0, 0, 1, 1], [], []>} : vector<8x576xf32>, vector<576x256xf32>, vector<8x256xf32> -> vector<8x256xf32>
    %30 = arith.addf %24, %29 : vector<8x256xf32>
    %c0_30 = arith.constant 0 : index
    %c0_31 = arith.constant 0 : index
    %c0_32 = arith.constant 0 : index
    %31 = vector.load %arg3[%c0_30, %c0_31, %c0_32] : memref<1x8x256xf32, #tpu.memory_space<vmem>>, vector<1x8x256xf32>
    %32 = vector.shape_cast %31 : vector<1x8x256xf32> to vector<8x256xf32>
    %33 = vector.shape_cast %30 : vector<8x256xf32> to vector<1x8x256xf32>
    tpu.vector_store %arg3[%c0_30, %c0_31, %c0_32], %33 {strides = array<i32>} : memref<1x8x256xf32, #tpu.memory_space<vmem>>, vector<1x8x256xf32>,
    %cst_33 = arith.constant dense<0.000000e+00> : vector<256xf32>
    %34 = vector.multi_reduction <add>, %30, %cst_33 [0] : vector<8x256xf32> to vector<256xf32>
    %35 = vector.shape_cast %34 : vector<256xf32> to vector<1x256xf32>
    %36 = arith.mulf %30, %30 : vector<8x256xf32>
    %cst_34 = arith.constant dense<0.000000e+00> : vector<256xf32>
    %37 = vector.multi_reduction <add>, %36, %cst_34 [0] : vector<8x256xf32> to vector<256xf32>
    %38 = vector.shape_cast %37 : vector<256xf32> to vector<1x256xf32>
    %39 = tpu.concatenate %35, %38 in 0 : vector<1x256xf32>, vector<1x256xf32> -> vector<2x256xf32>
    %c0_35 = arith.constant 0 : index
    %c0_36 = arith.constant 0 : index
    %c0_37 = arith.constant 0 : index
    %40 = vector.load %arg4[%c0_35, %c0_36, %c0_37] : memref<1x2x256xf32, #tpu.memory_space<vmem>>, vector<1x2x256xf32>
    %41 = vector.shape_cast %40 : vector<1x2x256xf32> to vector<2x256xf32>
    %42 = vector.shape_cast %39 : vector<2x256xf32> to vector<1x2x256xf32>
    tpu.vector_store %arg4[%c0_35, %c0_36, %c0_37], %42 {strides = array<i32>} : memref<1x2x256xf32, #tpu.memory_space<vmem>>, vector<1x2x256xf32>,
    return
  }
  func.func @transform_0(%arg0: i32) -> (i32, i32, i32) {
    %c0_i32 = arith.constant 0 : i32
    %c0_i32_0 = arith.constant 0 : i32
    %c0_i32_1 = arith.constant 0 : i32
    return %arg0, %c0_i32, %c0_i32_0 : i32, i32, i32
  }
  func.func @transform_1(%arg0: i32) -> (i32, i32, i32) {
    %c0_i32 = arith.constant 0 : i32
    %c0_i32_0 = arith.constant 0 : i32
    %c0_i32_1 = arith.constant 0 : i32
    %c0_i32_2 = arith.constant 0 : i32
    return %c0_i32, %c0_i32_0, %c0_i32_1 : i32, i32, i32
  }
  func.func @transform_2(%arg0: i32) -> (i32, i32, i32) {
    %c0_i32 = arith.constant 0 : i32
    %c0_i32_0 = arith.constant 0 : i32
    %c0_i32_1 = arith.constant 0 : i32
    return %arg0, %c0_i32, %c0_i32_0 : i32, i32, i32
  }
  func.func @transform_3(%arg0: i32) -> (i32, i32, i32) {
    %c0_i32 = arith.constant 0 : i32
    %c0_i32_0 = arith.constant 0 : i32
    %c0_i32_1 = arith.constant 0 : i32
    return %arg0, %c0_i32, %c0_i32_0 : i32, i32, i32
  }
}

module attributes {stable_mosaic.version = 11 : i64} {
  func.func @bn_prelu_kernel(%arg0: i32, %arg1: memref<16x256xf32, #tpu.memory_space<vmem>>, %arg2: memref<3x256xf32, #tpu.memory_space<vmem>>, %arg3: memref<16x256xf32, #tpu.memory_space<vmem>>) attributes {dimension_semantics = [#tpu.dimension_semantics<parallel>], iteration_bounds = array<i64: 1>, scalar_prefetch = 0 : i64, scratch_operands = 0 : i64, tpu.core_type = #tpu.core_type<tc>, window_params = [{transform_indices = @transform_0, window_bounds = array<i64: 16, 256>}, {pipeline_mode = #tpu.pipeline_mode<synchronous>, transform_indices = @transform_1, window_bounds = array<i64: 3, 256>}, {transform_indices = @transform_2, window_bounds = array<i64: 16, 256>}]} {
    %c0 = arith.constant 0 : index
    %c0_0 = arith.constant 0 : index
    %0 = vector.load %arg1[%c0, %c0_0] : memref<16x256xf32, #tpu.memory_space<vmem>>, vector<16x256xf32>
    %c0_1 = arith.constant 0 : index
    %c0_2 = arith.constant 0 : index
    %1 = vector.load %arg2[%c0_1, %c0_2] : memref<3x256xf32, #tpu.memory_space<vmem>>, vector<1x256xf32>
    %2 = vector.broadcast %1 : vector<1x256xf32> to vector<16x256xf32>
    %3 = arith.mulf %0, %2 : vector<16x256xf32>
    %c1 = arith.constant 1 : index
    %c0_3 = arith.constant 0 : index
    %4 = vector.load %arg2[%c1, %c0_3] : memref<3x256xf32, #tpu.memory_space<vmem>>, vector<1x256xf32>
    %5 = vector.broadcast %4 : vector<1x256xf32> to vector<16x256xf32>
    %6 = arith.addf %3, %5 : vector<16x256xf32>
    %cst = arith.constant 0.000000e+00 : f32
    %7 = vector.broadcast %cst : f32 to vector<16x256xf32>
    %8 = arith.cmpf oge, %6, %7 : vector<16x256xf32>
    %c2 = arith.constant 2 : index
    %c0_4 = arith.constant 0 : index
    %9 = vector.load %arg2[%c2, %c0_4] : memref<3x256xf32, #tpu.memory_space<vmem>>, vector<1x256xf32>
    %10 = vector.broadcast %9 : vector<1x256xf32> to vector<16x256xf32>
    %11 = arith.mulf %10, %6 : vector<16x256xf32>
    %12 = arith.select %8, %6, %11 : vector<16x256xi1>, vector<16x256xf32>
    %c0_5 = arith.constant 0 : index
    %c0_6 = arith.constant 0 : index
    %13 = vector.load %arg3[%c0_5, %c0_6] : memref<16x256xf32, #tpu.memory_space<vmem>>, vector<16x256xf32>
    tpu.vector_store %arg3[%c0_5, %c0_6], %12 {strides = array<i32>} : memref<16x256xf32, #tpu.memory_space<vmem>>, vector<16x256xf32>,
    return
  }
  func.func @transform_0(%arg0: i32) -> (i32, i32) {
    %c0_i32 = arith.constant 0 : i32
    %c0_i32_0 = arith.constant 0 : i32
    return %arg0, %c0_i32 : i32, i32
  }
  func.func @transform_1(%arg0: i32) -> (i32, i32) {
    %c0_i32 = arith.constant 0 : i32
    %c0_i32_0 = arith.constant 0 : i32
    %c0_i32_1 = arith.constant 0 : i32
    return %c0_i32, %c0_i32_0 : i32, i32
  }
  func.func @transform_2(%arg0: i32) -> (i32, i32) {
    %c0_i32 = arith.constant 0 : i32
    %c0_i32_0 = arith.constant 0 : i32
    return %arg0, %c0_i32 : i32, i32
  }
}

</mosaic_0001>

<llo_original>
// kernel: tile.18
$region0: #{tile.18}
  #allocation0 [shape = 's32[1]{0}', space=sflag, size = 0x4, scoped, tag = 'scoped memory for tile.18']
  %s0 = inlined_call_operand.vmem [shape: f32[4], index: 0, kind: input, shape index: {}]
  %s1 = inlined_call_operand.vmem [shape: f32[64,4], index: 1, kind: output, shape index: {}]
  // Predicated region
  $region2: #{tile.18} parent=0 // pred_check
    _
  $region3: #{tile.18} parent=0 // pred_check_branch
    %3 = sbr.rel (0) target = $region5
  $region4: #{tile.18} parent=0 // pred_region
    _
  $region5: #{tile.18} parent=0 // pred_fallthru
    _
  %v4 = vld [vmem:[%s0] ss:$0 sm:$0xff]
  %5 = vst [vmem:[%s1] sm:$0xff] %v4
  %s6 = scalar_lea.vmem %s1, 8
  %7 = vst [vmem:[%s6] sm:$0xff] %v4
  %s8 = scalar_lea.vmem %s1, 16
  %9 = vst [vmem:[%s8] sm:$0xff] %v4
  %s10 = scalar_lea.vmem %s1, 24
  %11 = vst [vmem:[%s10] sm:$0xff] %v4
  %s12 = scalar_lea.vmem %s1, 32
  %13 = vst [vmem:[%s12] sm:$0xff] %v4
  %s14 = scalar_lea.vmem %s1, 40
  %15 = vst [vmem:[%s14] sm:$0xff] %v4
  %s16 = scalar_lea.vmem %s1, 48
  %17 = vst [vmem:[%s16] sm:$0xff] %v4
  %s18 = scalar_lea.vmem %s1, 56
  %19 = vst [vmem:[%s18] sm:$0xff] %v4

// kernel: tile.27
$region0: #{tile.27}
  %s0 = inlined_call_operand.vmem [shape: f32[64,4], index: 0, kind: input, shape index: {}]
  %s1 = inlined_call_operand.vmem [shape: f32[1,256], index: 1, kind: output, shape index: {}]
  $region1: #{tile.27} parent=0
    #allocation0 [shape = 'u8[8192]{0}', space=vmem, size = 0x2000, scoped, tag = 'scoped mem for output reshape']
    %v2 = vld [vmem:[%s0] sm:$0x1]
    %s3 = scalar_lea.vmem %s0, 31
    %v4 = vld [vmem:[%s3] sm:$0x2]
    %vm5 = vcmask 1041409
    %v6 = vsel %vm5, %v4, %v2
    %vm7 = vcmask 31744
    %8 = vst.msk [vmem:[#allocation0] ss:$8 sm:$0x3] %vm7, %v6
    %s9 = scalar_lea.vmem %s0, 31
    %v10 = vld [vmem:[%s9] sm:$0x1]
    %s11 = scalar_lea.vmem %s0, 62
    %v12 = vld [vmem:[%s11] sm:$0x2]
    %vm13 = vcmask 1041409
    %v14 = vsel %vm13, %v12, %v10
    %15 = vrot.lane.b32.xlu0 %v14, 124
    %v16 = vpop.permute.xlu0 %15
    %vm17 = vcmask 1048544
    %18 = vst.msk [vmem:[#allocation0] ss:$8 sm:$0x3] %vm17, %v16
    %s19 = scalar_lea.vmem %s0, 30
    %v20 = vld [vmem:[%s19] sm:$0x1]
    %s21 = scalar_lea.vmem %s0, 61
    %v22 = vld [vmem:[%s21] sm:$0x2]
    %vm23 = vcmask 1041409
    %v24 = vsel %vm23, %v22, %v20
    %25 = vrot.lane.b32.xlu0 %v24, 120
    %v26 = vpop.permute.xlu0 %25
    %vm27 = vcmask 1015744
    %28 = vst.msk [vmem:[#allocation0] ss:$8 sm:$0x3] %vm27, %v26
    %s29 = scalar_lea.vmem %s0, 29
    %v30 = vld [vmem:[%s29] sm:$0x1]
    %s31 = scalar_lea.vmem %s0, 60
    %v32 = vld [vmem:[%s31] sm:$0x2]
    %vm33 = vcmask 1041409
    %v34 = vsel %vm33, %v32, %v30
    %35 = vrot.lane.b32.xlu0 %v34, 116
    %v36 = vpop.permute.xlu0 %35
    %vm37 = vcmask 982944
    %38 = vst.msk [vmem:[#allocation0] ss:$8 sm:$0x3] %vm37, %v36
    %s39 = scalar_lea.vmem %s0, 28
    %v40 = vld [vmem:[%s39] sm:$0x1]
    %s41 = scalar_lea.vmem %s0, 59
    %v42 = vld [vmem:[%s41] sm:$0x2]
    %vm43 = vcmask 1041409
    %v44 = vsel %vm43, %v42, %v40
    %45 = vrot.lane.b32.xlu0 %v44, 112
    %v46 = vpop.permute.xlu0 %45
    %vm47 = vcmask 950144
    %48 = vst.msk [vmem:[#allocation0] ss:$8 sm:$0x3] %vm47, %v46
    %s49 = scalar_lea.vmem %s0, 27
    %v50 = vld [vmem:[%s49] sm:$0x1]
    %s51 = scalar_lea.vmem %s0, 58
    %v52 = vld [vmem:[%s51] sm:$0x2]
    %vm53 = vcmask 1041409
    %v54 = vsel %vm53, %v52, %v50
    %55 = vrot.lane.b32.xlu0 %v54, 108
    %v56 = vpop.permute.xlu0 %55
    %vm57 = vcmask 917344
    %58 = vst.msk [vmem:[#allocation0] ss:$8 sm:$0x3] %vm57, %v56
    %s59 = scalar_lea.vmem %s0, 26
    %v60 = vld [vmem:[%s59] sm:$0x1]
    %s61 = scalar_lea.vmem %s0, 57
    %v62 = vld [vmem:[%s61] sm:$0x2]
    %vm63 = vcmask 1041409
    %v64 = vsel %vm63, %v62, %v60
    %65 = vrot.lane.b32.xlu0 %v64, 104
    %v66 = vpop.permute.xlu0 %65
    %vm67 = vcmask 884544
    %68 = vst.msk [vmem:[#allocation0] ss:$8 sm:$0x3] %vm67, %v66
    %s69 = scalar_lea.vmem %s0, 25
    %v70 = vld [vmem:[%s69] sm:$0x1]
    %s71 = scalar_lea.vmem %s0, 56
    %v72 = vld [vmem:[%s71] sm:$0x2]
    %vm73 = vcmask 1041409
    %v74 = vsel %vm73, %v72, %v70
    %75 = vrot.lane.b32.xlu0 %v74, 100
    %v76 = vpop.permute.xlu0 %75
    %vm77 = vcmask 851744
    %78 = vst.msk [vmem:[#allocation0] ss:$8 sm:$0x3] %vm77, %v76
    %s79 = scalar_lea.vmem %s0, 24
    %v80 = vld [vmem:[%s79] sm:$0x1]
    %s81 = scalar_lea.vmem %s0, 55
    %v82 = vld [vmem:[%s81] sm:$0x2]
    %vm83 = vcmask 1041409
    %v84 = vsel %vm83, %v82, %v80
    %85 = vrot.lane.b32.xlu0 %v84, 96
    %v86 = vpop.permute.xlu0 %85
    %vm87 = vcmask 818944
    %88 = vst.msk [vmem:[#allocation0] ss:$8 sm:$0x3] %vm87, %v86
    %s89 = scalar_lea.vmem %s0, 23
    %v90 = vld [vmem:[%s89] sm:$0x1]
    %s91 = scalar_lea.vmem %s0, 54
    %v92 = vld [vmem:[%s91] sm:$0x2]
    %vm93 = vcmask 1041409
    %v94 = vsel %vm93, %v92, %v90
    %95 = vrot.lane.b32.xlu0 %v94, 92
    %v96 = vpop.permute.xlu0 %95
    %vm97 = vcmask 786144
    %98 = vst.msk [vmem:[#allocation0] ss:$8 sm:$0x3] %vm97, %v96
    %s99 = scalar_lea.vmem %s0, 22
    %v100 = vld [vmem:[%s99] sm:$0x1]
    %s101 = scalar_lea.vmem %s0, 53
    %v102 = vld [vmem:[%s101] sm:$0x2]
    %vm103 = vcmask 1041409
    %v104 = vsel %vm103, %v102, %v100
    %105 = vrot.lane.b32.xlu0 %v104, 88
    %v106 = vpop.permute.xlu0 %105
    %vm107 = vcmask 753344
    %108 = vst.msk [vmem:[#allocation0] ss:$8 sm:$0x3] %vm107, %v106
    %s109 = scalar_lea.vmem %s0, 21
    %v110 = vld [vmem:[%s109] sm:$0x1]
    %s111 = scalar_lea.vmem %s0, 52
    %v112 = vld [vmem:[%s111] sm:$0x2]
    %vm113 = vcmask 1041409
    %v114 = vsel %vm113, %v112, %v110
    %115 = vrot.lane.b32.xlu0 %v114, 84
    %v116 = vpop.permute.xlu0 %115
    %vm117 = vcmask 720544
    %118 = vst.msk [vmem:[#allocation0] ss:$8 sm:$0x3] %vm117, %v116
    %s119 = scalar_lea.vmem %s0, 20
    %v120 = vld [vmem:[%s119] sm:$0x1]
    %s121 = scalar_lea.vmem %s0, 51
    %v122 = vld [vmem:[%s121] sm:$0x2]
    %vm123 = vcmask 1041409
    %v124 = vsel %vm123, %v122, %v120
    %125 = vrot.lane.b32.xlu0 %v124, 80
    %v126 = vpop.permute.xlu0 %125
    %vm127 = vcmask 687744
    %128 = vst.msk [vmem:[#allocation0] ss:$8 sm:$0x3] %vm127, %v126
    %s129 = scalar_lea.vmem %s0, 19
    %v130 = vld [vmem:[%s129] sm:$0x1]
    %s131 = scalar_lea.vmem %s0, 50
    %v132 = vld [vmem:[%s131] sm:$0x2]
    %vm133 = vcmask 1041409
    %v134 = vsel %vm133, %v132, %v130
    %135 = vrot.lane.b32.xlu0 %v134, 76
    %v136 = vpop.permute.xlu0 %135
    %vm137 = vcmask 654944
    %138 = vst.msk [vmem:[#allocation0] ss:$8 sm:$0x3] %vm137, %v136
    %s139 = scalar_lea.vmem %s0, 18
    %v140 = vld [vmem:[%s139] sm:$0x1]
    %s141 = scalar_lea.vmem %s0, 49
    %v142 = vld [vmem:[%s141] sm:$0x2]
    %vm143 = vcmask 1041409
    %v144 = vsel %vm143, %v142, %v140
    %145 = vrot.lane.b32.xlu0 %v144, 72
    %v146 = vpop.permute.xlu0 %145
    %vm147 = vcmask 622144
    %148 = vst.msk [vmem:[#allocation0] ss:$8 sm:$0x3] %vm147, %v146
    %s149 = scalar_lea.vmem %s0, 17
    %v150 = vld [vmem:[%s149] sm:$0x1]
    %s151 = scalar_lea.vmem %s0, 48
    %v152 = vld [vmem:[%s151] sm:$0x2]
    %vm153 = vcmask 1041409
    %v154 = vsel %vm153, %v152, %v150
    %155 = vrot.lane.b32.xlu0 %v154, 68
    %v156 = vpop.permute.xlu0 %155
    %vm157 = vcmask 589344
    %158 = vst.msk [vmem:[#allocation0] ss:$8 sm:$0x3] %vm157, %v156
    %s159 = scalar_lea.vmem %s0, 16
    %v160 = vld [vmem:[%s159] sm:$0x1]
    %s161 = scalar_lea.vmem %s0, 47
    %v162 = vld [vmem:[%s161] sm:$0x2]
    %vm163 = vcmask 1041409
    %v164 = vsel %vm163, %v162, %v160
    %165 = vrot.lane.b32.xlu0 %v164, 64
    %v166 = vpop.permute.xlu0 %165
    %vm167 = vcmask 556544
    %168 = vst.msk [vmem:[#allocation0] ss:$8 sm:$0x3] %vm167, %v166
    %s169 = scalar_lea.vmem %s0, 15
    %v170 = vld [vmem:[%s169] sm:$0x1]
    %s171 = scalar_lea.vmem %s0, 46
    %v172 = vld [vmem:[%s171] sm:$0x2]
    %vm173 = vcmask 1041409
    %v174 = vsel %vm173, %v172, %v170
    %175 = vrot.lane.b32.xlu0 %v174, 60
    %v176 = vpop.permute.xlu0 %175
    %vm177 = vcmask 523744
    %178 = vst.msk [vmem:[#allocation0] ss:$8 sm:$0x3] %vm177, %v176
    %s179 = scalar_lea.vmem %s0, 14
    %v180 = vld [vmem:[%s179] sm:$0x1]
    %s181 = scalar_lea.vmem %s0, 45
    %v182 = vld [vmem:[%s181] sm:$0x2]
    %vm183 = vcmask 1041409
    %v184 = vsel %vm183, %v182, %v180
    %185 = vrot.lane.b32.xlu0 %v184, 56
    %v186 = vpop.permute.xlu0 %185
    %vm187 = vcmask 490944
    %188 = vst.msk [vmem:[#allocation0] ss:$8 sm:$0x3] %vm187, %v186
    %s189 = scalar_lea.vmem %s0, 13
    %v190 = vld [vmem:[%s189] sm:$0x1]
    %s191 = scalar_lea.vmem %s0, 44
    %v192 = vld [vmem:[%s191] sm:$0x2]
    %vm193 = vcmask 1041409
    %v194 = vsel %vm193, %v192, %v190
    %195 = vrot.lane.b32.xlu0 %v194, 52
    %v196 = vpop.permute.xlu0 %195
    %vm197 = vcmask 458144
    %198 = vst.msk [vmem:[#allocation0] ss:$8 sm:$0x3] %vm197, %v196
    %s199 = scalar_lea.vmem %s0, 12
    %v200 = vld [vmem:[%s199] sm:$0x1]
    %s201 = scalar_lea.vmem %s0, 43
    %v202 = vld [vmem:[%s201] sm:$0x2]
    %vm203 = vcmask 1041409
    %v204 = vsel %vm203, %v202, %v200
    %205 = vrot.lane.b32.xlu0 %v204, 48
    %v206 = vpop.permute.xlu0 %205
    %vm207 = vcmask 425344
    %208 = vst.msk [vmem:[#allocation0] ss:$8 sm:$0x3] %vm207, %v206
    %s209 = scalar_lea.vmem %s0, 11
    %v210 = vld [vmem:[%s209] sm:$0x1]
    %s211 = scalar_lea.vmem %s0, 42
    %v212 = vld [vmem:[%s211] sm:$0x2]
    %vm213 = vcmask 1041409
    %v214 = vsel %vm213, %v212, %v210
    %215 = vrot.lane.b32.xlu0 %v214, 44
    %v216 = vpop.permute.xlu0 %215
    %vm217 = vcmask 392544
    %218 = vst.msk [vmem:[#allocation0] ss:$8 sm:$0x3] %vm217, %v216
    %s219 = scalar_lea.vmem %s0, 10
    %v220 = vld [vmem:[%s219] sm:$0x1]
    %s221 = scalar_lea.vmem %s0, 41
    %v222 = vld [vmem:[%s221] sm:$0x2]
    %vm223 = vcmask 1041409
    %v224 = vsel %vm223, %v222, %v220
    %225 = vrot.lane.b32.xlu0 %v224, 40
    %v226 = vpop.permute.xlu0 %225
    %vm227 = vcmask 359744
    %228 = vst.msk [vmem:[#allocation0] ss:$8 sm:$0x3] %vm227, %v226
    %s229 = scalar_lea.vmem %s0, 9
    %v230 = vld [vmem:[%s229] sm:$0x1]
    %s231 = scalar_lea.vmem %s0, 40
    %v232 = vld [vmem:[%s231] sm:$0x2]
    %vm233 = vcmask 1041409
    %v234 = vsel %vm233, %v232, %v230
    %235 = vrot.lane.b32.xlu0 %v234, 36
    %v236 = vpop.permute.xlu0 %235
    %vm237 = vcmask 326944
    %238 = vst.msk [vmem:[#allocation0] ss:$8 sm:$0x3] %vm237, %v236
    %s239 = scalar_lea.vmem %s0, 8
    %v240 = vld [vmem:[%s239] sm:$0x1]
    %s241 = scalar_lea.vmem %s0, 39
    %v242 = vld [vmem:[%s241] sm:$0x2]
    %vm243 = vcmask 1041409
    %v244 = vsel %vm243, %v242, %v240
    %245 = vrot.lane.b32.xlu0 %v244, 32
    %v246 = vpop.permute.xlu0 %245
    %vm247 = vcmask 294144
    %248 = vst.msk [vmem:[#allocation0] ss:$8 sm:$0x3] %vm247, %v246
    %s249 = scalar_lea.vmem %s0, 7
    %v250 = vld [vmem:[%s249] sm:$0x1]
    %s251 = scalar_lea.vmem %s0, 38
    %v252 = vld [vmem:[%s251] sm:$0x2]
    %vm253 = vcmask 1041409
    %v254 = vsel %vm253, %v252, %v250
    %255 = vrot.lane.b32.xlu0 %v254, 28
    %v256 = vpop.permute.xlu0 %255
    %vm257 = vcmask 261344
    %258 = vst.msk [vmem:[#allocation0] ss:$8 sm:$0x3] %vm257, %v256
    %s259 = scalar_lea.vmem %s0, 6
    %v260 = vld [vmem:[%s259] sm:$0x1]
    %s261 = scalar_lea.vmem %s0, 37
    %v262 = vld [vmem:[%s261] sm:$0x2]
    %vm263 = vcmask 1041409
    %v264 = vsel %vm263, %v262, %v260
    %265 = vrot.lane.b32.xlu0 %v264, 24
    %v266 = vpop.permute.xlu0 %265
    %vm267 = vcmask 228544
    %268 = vst.msk [vmem:[#allocation0] ss:$8 sm:$0x3] %vm267, %v266
    %s269 = scalar_lea.vmem %s0, 5
    %v270 = vld [vmem:[%s269] sm:$0x1]
    %s271 = scalar_lea.vmem %s0, 36
    %v272 = vld [vmem:[%s271] sm:$0x2]
    %vm273 = vcmask 1041409
    %v274 = vsel %vm273, %v272, %v270
    %275 = vrot.lane.b32.xlu0 %v274, 20
    %v276 = vpop.permute.xlu0 %275
    %vm277 = vcmask 195744
    %278 = vst.msk [vmem:[#allocation0] ss:$8 sm:$0x3] %vm277, %v276
    %s279 = scalar_lea.vmem %s0, 4
    %v280 = vld [vmem:[%s279] sm:$0x1]
    %s281 = scalar_lea.vmem %s0, 35
    %v282 = vld [vmem:[%s281] sm:$0x2]
    %vm283 = vcmask 1041409
    %v284 = vsel %vm283, %v282, %v280
    %285 = vrot.lane.b32.xlu0 %v284, 16
    %v286 = vpop.permute.xlu0 %285
    %vm287 = vcmask 162944
    %288 = vst.msk [vmem:[#allocation0] ss:$8 sm:$0x3] %vm287, %v286
    %s289 = scalar_lea.vmem %s0, 3
    %v290 = vld [vmem:[%s289] sm:$0x1]
    %s291 = scalar_lea.vmem %s0, 34
    %v292 = vld [vmem:[%s291] sm:$0x2]
    %vm293 = vcmask 1041409
    %v294 = vsel %vm293, %v292, %v290
    %295 = vrot.lane.b32.xlu0 %v294, 12
    %v296 = vpop.permute.xlu0 %295
    %vm297 = vcmask 130144
    %298 = vst.msk [vmem:[#allocation0] ss:$8 sm:$0x3] %vm297, %v296
    %s299 = scalar_lea.vmem %s0, 2
    %v300 = vld [vmem:[%s299] sm:$0x1]
    %s301 = scalar_lea.vmem %s0, 33
    %v302 = vld [vmem:[%s301] sm:$0x2]
    %vm303 = vcmask 1041409
    %v304 = vsel %vm303, %v302, %v300
    %305 = vrot.lane.b32.xlu0 %v304, 8
    %v306 = vpop.permute.xlu0 %305
    %vm307 = vcmask 97344
    %308 = vst.msk [vmem:[#allocation0] ss:$8 sm:$0x3] %vm307, %v306
    %s309 = scalar_lea.vmem %s0, 1
    %v310 = vld [vmem:[%s309] sm:$0x1]
    %s311 = scalar_lea.vmem %s0, 32
    %v312 = vld [vmem:[%s311] sm:$0x2]
    %vm313 = vcmask 1041409
    %v314 = vsel %vm313, %v312, %v310
    %315 = vrot.lane.b32.xlu0 %v314, 4
    %v316 = vpop.permute.xlu0 %315
    %vm317 = vcmask 64544
    %318 = vst.msk [vmem:[#allocation0] ss:$8 sm:$0x3] %vm317, %v316
    %s320 = sshllo.u32 0, 1
    %v322 = vld [vmem:[#allocation0] sm:%s320]
    %s323 = sshllo.u32 0, 1
    %324 = vst [vmem:[%s1] sm:%s323] %v322
    %s325 = scalar_lea.vmem [#allocation0], 8
    %v326 = vld [vmem:[%s325] sm:%s320]
    %s327 = sshllo.u32 0, 1
    %s328 = scalar_lea.vmem %s1, 1
    %329 = vst [vmem:[%s328] sm:%s327] %v326

// kernel: luconv_forward.3
$region0: #{luconv_forward.3}
  #allocation0 [shape = 'u32[]', space=smem, size = 0x4, offset = 0x4, fixed_abs, tag = 'smem constant byte address 0x4 - core index']
  #allocation1 [shape = 'u32[144,128]{1,0:T(1,128)}', space=vmem, size = 0x12000, scoped, tag = 'internal scratch']
  %s0 = inlined_call_operand.vmem [shape: f32[16,256], index: 0, kind: input, shape index: {}]
  %s1 = inlined_call_operand.vmem [shape: f32[3,256], index: 1, kind: input, shape index: {}]
  %s2 = inlined_call_operand.vmem [shape: f32[16,256], index: 2, kind: output, shape index: {}]
  %s3 = sld [smem:[#allocation0]]
  $region18: #{luconv_forward.3} parent=0
    _
  %s5 = ssub.s32 1, %s3
  %s6 = scalar_select 0, %s5, %s3
  // Predicated region
  $region2: #{luconv_forward.3} parent=0 // pred_check
    _
  $region3: #{luconv_forward.3} parent=0 // pred_check_branch
    %8 = sbr.rel (0) target = $region5
  $region4: #{luconv_forward.3} parent=0 // pred_region
    _
  $region5: #{luconv_forward.3} parent=0 // pred_fallthru
    _
  // Predicated region
  $region6: #{luconv_forward.3} parent=0 // pred_check
    _
  $region7: #{luconv_forward.3} parent=0 // pred_check_branch
    %10 = sbr.rel (0) target = $region9
  $region8: #{luconv_forward.3} parent=0 // pred_region
    _
  $region9: #{luconv_forward.3} parent=0 // pred_fallthru
    _
  %v11 = vld [vmem:[%s0] sm:$0xff]
  %v12 = vld [vmem:[%s0 + $0x8] sm:$0xff]
  %v13 = vld [vmem:[%s0 + $0x10] sm:$0xff]
  %v14 = vld [vmem:[%s0 + $0x18] sm:$0xff]
  %v15 = vld [vmem:[%s1] ss:$4 sm:$0x3]
  %v17 = vlaneseq
  %v18 = vshrl.u32 %v17, 7
  %v19 = vsub.s32 0, %v18
  %v20 = vrot.slane %v15, %v19
  %v21 = vlaneseq
  %v22 = vshrl.u32 %v21, 7
  %v23 = vsub.s32 1, %v22
  %v24 = vrot.slane %v15, %v23
  %v27 = vmul.f32 %v11, %v20
  %v28 = vmul.f32 %v12, %v24
  %v29 = vmul.f32 %v13, %v20
  %v30 = vmul.f32 %v14, %v24
  %s31 = scalar_lea.vmem %s1, 1
  %v32 = vld [vmem:[%s31] ss:$4 sm:$0x3]
  %v34 = vlaneseq
  %v35 = vshrl.u32 %v34, 7
  %v36 = vsub.s32 0, %v35
  %v37 = vrot.slane %v32, %v36
  %v38 = vlaneseq
  %v39 = vshrl.u32 %v38, 7
  %v40 = vsub.s32 1, %v39
  %v41 = vrot.slane %v32, %v40
  %v44 = vadd.f32 %v27, %v37
  %v45 = vadd.f32 %v28, %v41
  %v46 = vadd.f32 %v29, %v37
  %v47 = vadd.f32 %v30, %v41
  %vm48 = vcmp.ge.f32.partialorder %v44, 0.0
  %vm49 = vcmp.ge.f32.partialorder %v45, 0.0
  %vm50 = vcmp.ge.f32.partialorder %v46, 0.0
  %vm51 = vcmp.ge.f32.partialorder %v47, 0.0
  %s52 = scalar_lea.vmem %s1, 2
  %v53 = vld [vmem:[%s52] ss:$4 sm:$0x3]
  %v55 = vlaneseq
  %v56 = vshrl.u32 %v55, 7
  %v57 = vsub.s32 0, %v56
  %v58 = vrot.slane %v53, %v57
  %v59 = vlaneseq
  %v60 = vshrl.u32 %v59, 7
  %v61 = vsub.s32 1, %v60
  %v62 = vrot.slane %v53, %v61
  %v65 = vmul.f32 %v58, %v44
  %v66 = vmul.f32 %v62, %v45
  %v67 = vmul.f32 %v58, %v46
  %v68 = vmul.f32 %v62, %v47
  %v69 = vsel %vm48, %v44, %v65
  %v70 = vsel %vm49, %v45, %v66
  %v71 = vsel %vm50, %v46, %v67
  %v72 = vsel %vm51, %v47, %v68
  %73 = vst [vmem:[%s2] sm:$0xff] %v69
  %74 = vst [vmem:[%s2 + $0x8] sm:$0xff] %v70
  %75 = vst [vmem:[%s2 + $0x10] sm:$0xff] %v71
  %76 = vst [vmem:[%s2 + $0x18] sm:$0xff] %v72
  // Predicated region
  $region10: #{luconv_forward.3} parent=0 // pred_check
    _
  $region11: #{luconv_forward.3} parent=0 // pred_check_branch
    %78 = sbr.rel (0) target = $region13
  $region12: #{luconv_forward.3} parent=0 // pred_region
    _
  $region13: #{luconv_forward.3} parent=0 // pred_fallthru
    _
  // Predicated region
  $region14: #{luconv_forward.3} parent=0 // pred_check
    _
  $region15: #{luconv_forward.3} parent=0 // pred_check_branch
    %80 = sbr.rel (0) target = $region17
  $region16: #{luconv_forward.3} parent=0 // pred_region
    _
  $region17: #{luconv_forward.3} parent=0 // pred_fallthru
    _

// kernel: luconv_forward.2
$region0: #{luconv_forward.2}
  #allocation0 [shape = 'u32[]', space=smem, size = 0x4, offset = 0x4, fixed_abs, tag = 'smem constant byte address 0x4 - core index']
  #allocation1 [shape = 'u32[144,128]{1,0:T(1,128)}', space=vmem, size = 0x12000, scoped, tag = 'internal scratch']
  %s0 = inlined_call_operand.vmem [shape: f32[2,12,576], index: 0, kind: input, shape index: {}]
  %s1 = inlined_call_operand.vmem [shape: f32[5,576,256], index: 1, kind: input, shape index: {}]
  %s2 = inlined_call_operand.vmem [shape: f32[2,8,256], index: 2, kind: output, shape index: {0}]
  %s3 = inlined_call_operand.vmem [shape: f32[2,2,256], index: 3, kind: output, shape index: {1}]
  %4 = xla_tuple %s2, %s3
  %s5 = sld [smem:[#allocation0]]
  $region49: #{luconv_forward.2} parent=0
    _
  %s7 = ssub.s32 1, %s5
  %s8 = scalar_select 0, %s7, %s5
  loop: start=0, step=1, limit=4
  $region2: #{luconv_forward.2} parent=0 // loop_pre_header
    _
  $region3: #{luconv_forward.2} parent=0 // loop_header
    %s10 = sphi 0, %s14
    %p11 = scmp.ge.s32.totalorder %s10, 4
    %s20 = sphi 0, %s22
    %s23 = sphi 0, %s20
    %s24 = sphi 0, %s23
    %s40 = sphi 0, %s24
    %s44 = sphi 0, %s44
    %s46 = sphi 0, %s44
    %s47 = sphi 0, %s46
    %s61 = sphi 0, %s47
    %s67 = sphi 0, %s69
    %s70 = sphi 0, %s67
    %s71 = sphi 0, %s70
    %s87 = sphi 0, %s71
    %s93 = sphi 0, %s95
    %s96 = sphi 0, %s93
    %s97 = sphi 0, %s96
    %s113 = sphi 0, %s97
  $region4: #{luconv_forward.2} parent=0 // loop_header_branch
    %13 = sbr.rel (%p11) target = $region8
  $region5: #{luconv_forward.2} parent=0 // loop_body
    %s15 = ssub.s32 %s10, 1
    %s16 = ssub.s32 %s10, 2
    %s17 = sadd.s32 %s10, 1
    %s18 = ssub.s32 %s10, %s17
    %p19 = scmp.eq.s32.totalorder %s18, 0
    %s21 = sadd.s32 %s20, 1
    %s22 = scalar_select %p19, %s20, %s21
    %p25 = pneg %p19
    %p26 = scmp.eq.s32.totalorder %s10, 1
    %p27 = por %p25, %p26
    %p28 = scmp.ne.s32.totalorder %s20, %s23
    %p29 = scmp.eq.s32.totalorder %s10, 0
    %p30 = por %p28, %p29
    %p31 = scmp.ne.s32.totalorder %s20, %s23
    %p32 = scmp.eq.s32.totalorder %s15, 1
    %p33 = por %p31, %p32
    %p34 = scmp.ne.s32.totalorder %s23, %s24
    %p35 = scmp.eq.s32.totalorder %s15, 0
    %p36 = por %p34, %p35
    %p37 = scmp.ne.s32.totalorder %s23, %s24
    %p38 = scmp.eq.s32.totalorder %s16, 1
    %p39 = por %p37, %p38
    %p41 = scmp.ne.s32.totalorder %s24, %s40
    %p42 = scmp.eq.s32.totalorder %s16, 0
    %p43 = por %p41, %p42
    %s45 = sadd.s32 %s44, 1
    %p48 = scmp.eq.s32.totalorder %s10, 1
    %p49 = scmp.ne.s32.totalorder %s44, %s46
    %p50 = scmp.eq.s32.totalorder %s10, 0
    %p51 = por %p49, %p50
    %p52 = scmp.ne.s32.totalorder %s44, %s46
    %p53 = scmp.eq.s32.totalorder %s15, 1
    %p54 = por %p52, %p53
    %p55 = scmp.ne.s32.totalorder %s46, %s47
    %p56 = scmp.eq.s32.totalorder %s15, 0
    %p57 = por %p55, %p56
    %p58 = scmp.ne.s32.totalorder %s46, %s47
    %p59 = scmp.eq.s32.totalorder %s16, 1
    %p60 = por %p58, %p59
    %p62 = scmp.ne.s32.totalorder %s47, %s61
    %p63 = scmp.eq.s32.totalorder %s16, 0
    %p64 = por %p62, %p63
    %s65 = ssub.s32 %s10, %s17
    %p66 = scmp.eq.s32.totalorder %s65, 0
    %s68 = sadd.s32 %s67, 1
    %s69 = scalar_select %p66, %s67, %s68
    %p72 = pneg %p66
    %p73 = scmp.eq.s32.totalorder %s10, 1
    %p74 = por %p72, %p73
    %p75 = scmp.ne.s32.totalorder %s67, %s70
    %p76 = scmp.eq.s32.totalorder %s10, 0
    %p77 = por %p75, %p76
    %p78 = scmp.ne.s32.totalorder %s67, %s70
    %p79 = scmp.eq.s32.totalorder %s15, 1
    %p80 = por %p78, %p79
    %p81 = scmp.ne.s32.totalorder %s70, %s71
    %p82 = scmp.eq.s32.totalorder %s15, 0
    %p83 = por %p81, %p82
    %p84 = scmp.ne.s32.totalorder %s70, %s71
    %p85 = scmp.eq.s32.totalorder %s16, 1
    %p86 = por %p84, %p85
    %p88 = scmp.ne.s32.totalorder %s71, %s87
    %p89 = scmp.eq.s32.totalorder %s16, 0
    %p90 = por %p88, %p89
    %s91 = ssub.s32 %s10, %s17
    %p92 = scmp.eq.s32.totalorder %s91, 0
    %s94 = sadd.s32 %s93, 1
    %s95 = scalar_select %p92, %s93, %s94
    %p98 = pneg %p92
    %p99 = scmp.eq.s32.totalorder %s10, 1
    %p100 = por %p98, %p99
    %p101 = scmp.ne.s32.totalorder %s93, %s96
    %p102 = scmp.eq.s32.totalorder %s10, 0
    %p103 = por %p101, %p102
    %p104 = scmp.ne.s32.totalorder %s93, %s96
    %p105 = scmp.eq.s32.totalorder %s15, 1
    %p106 = por %p104, %p105
    %p107 = scmp.ne.s32.totalorder %s96, %s97
    %p108 = scmp.eq.s32.totalorder %s15, 0
    %p109 = por %p107, %p108
    %p110 = scmp.ne.s32.totalorder %s96, %s97
    %p111 = scmp.eq.s32.totalorder %s16, 1
    %p112 = por %p110, %p111
    %p114 = scmp.ne.s32.totalorder %s97, %s113
    %p115 = scmp.eq.s32.totalorder %s16, 0
    %p116 = por %p114, %p115
    %p117 = scmp.le.s32.totalorder 1, %s10
    %p118 = scmp.lt.s32.totalorder %s10, 3
    %p119 = pnand %p117, %p118
    %p120 = pneg %p119
    // Predicated region
    $region9: #{luconv_forward.2} parent=5 // pred_check
      _
    $region10: #{luconv_forward.2} parent=5 // pred_check_branch
      %122 = sbr.rel (%p119) target = $region12
    $region11: #{luconv_forward.2} parent=5 // pred_region
      %s123 = ssub.s32 %s10, 1
      // Predicated region
      $region13: #{luconv_forward.2} parent=11 // pred_check
        %p124 = pneg %p57
      $region14: #{luconv_forward.2} parent=11 // pred_check_branch
        %126 = sbr.rel (%p124) target = $region16
      $region15: #{luconv_forward.2} parent=11 // pred_region
        _
      $region16: #{luconv_forward.2} parent=11 // pred_fallthru
        _
    $region12: #{luconv_forward.2} parent=5 // pred_fallthru
      _
    %p127 = scmp.lt.s32.totalorder %s10, 2
    // Predicated region
    $region17: #{luconv_forward.2} parent=5 // pred_check
      %p128 = pneg %p127
    $region18: #{luconv_forward.2} parent=5 // pred_check_branch
      %130 = sbr.rel (%p128) target = $region20
    $region19: #{luconv_forward.2} parent=5 // pred_region
      // Predicated region
      $region21: #{luconv_forward.2} parent=19 // pred_check
        %p131 = pneg %p30
      $region22: #{luconv_forward.2} parent=19 // pred_check_branch
        %133 = sbr.rel (%p131) target = $region24
      $region23: #{luconv_forward.2} parent=19 // pred_region
        %p134 = scmp.lt.s32.totalorder %s10, 1
        %s135 = scalar_select %p134, %s10, 1
        %s136 = smul.addr %s135, 10
        %s137 = smul.addr %s136, 8
        %s138 = scalar_lea.vmem %s0, %s137
      $region24: #{luconv_forward.2} parent=19 // pred_fallthru
        _
    $region20: #{luconv_forward.2} parent=5 // pred_fallthru
      _
    %p139 = scmp.le.s32.totalorder 1, %s10
    %p140 = scmp.lt.s32.totalorder %s10, 3
    %p141 = pnand %p139, %p140
    %p142 = pneg %p141
    // Predicated region
    $region25: #{luconv_forward.2} parent=5 // pred_check
      _
    $region26: #{luconv_forward.2} parent=5 // pred_check_branch
      %144 = sbr.rel (%p141) target = $region28
    $region27: #{luconv_forward.2} parent=5 // pred_region
      %s145 = ssub.s32 %s10, 1
      %p146 = scmp.lt.s32.totalorder %s15, 1
      %s147 = scalar_select %p146, %s15, 1
      %s148 = smul.addr %s147, 10
      %s149 = smul.addr %s148, 8
      %s150 = scalar_lea.vmem %s0, %s149
      %p151 = pneg %p36
      %p152 = pneg %p33
      %p153 = pneg %p57
      %p154 = pneg %p54
      %p155 = pneg %p83
      %p156 = pneg %p80
      %p157 = scmp.lt.s32.totalorder %s15, 1
      %s158 = scalar_select %p157, %s15, 1
      %s159 = smul.addr %s158, 2
      %s160 = smul.addr %s159, 8
      %s161 = scalar_lea.vmem %s2, %s160
      %p162 = pneg %p109
      %p163 = pneg %p106
      %p164 = scmp.lt.s32.totalorder %s15, 1
      %s165 = scalar_select %p164, %s15, 1
      %s166 = smul.addr %s165, 2
      %s167 = smul.addr %s166, 2
      %s168 = scalar_lea.vmem %s3, %s167
      %p169 = scmp.lt.s32.totalorder %s15, 1
      %s170 = scalar_select %p169, %s15, 1
      %s171 = smul.addr %s170, 10
      %s172 = smul.addr %s171, 8
      %s173 = scalar_lea.vmem %s0, %s172
      %p174 = scmp.lt.s32.totalorder %s15, 1
      %s175 = scalar_select %p174, %s15, 1
      %s176 = smul.addr %s175, 2
      %s177 = smul.addr %s176, 8
      %s178 = scalar_lea.vmem %s2, %s177
      %p179 = scmp.lt.s32.totalorder %s15, 1
      %s180 = scalar_select %p179, %s15, 1
      %s181 = smul.addr %s180, 2
      %s182 = smul.addr %s181, 2
      %s183 = scalar_lea.vmem %s3, %s182
      %v184 = vld [vmem:[%s173] sm:$0xff]
      %v185 = vld [vmem:[%s173 + $0x8] sm:$0xff]
      %v186 = vld [vmem:[%s173 + $0x10] sm:$0xff]
      %v187 = vld [vmem:[%s173 + $0x18] sm:$0xff]
      %v188 = vld [vmem:[%s173 + $0x20] sm:$0xff]
      %v189 = vld [vmem:[%s1] sm:$0xff]
      %v190 = vld [vmem:[%s1 + $0x8] sm:$0xff]
      %v191 = vld [vmem:[%s1 + $0x10] sm:$0xff]
      %v192 = vld [vmem:[%s1 + $0x18] sm:$0xff]
      %v193 = vld [vmem:[%s1 + $0x20] sm:$0xff]
      %v194 = vld [vmem:[%s1 + $0x28] sm:$0xff]
      %v195 = vld [vmem:[%s1 + $0x30] sm:$0xff]
      %v196 = vld [vmem:[%s1 + $0x38] sm:$0xff]
      %v197 = vld [vmem:[%s1 + $0x40] sm:$0xff]
      %v198 = vld [vmem:[%s1 + $0x48] sm:$0xff]
      %v199 = vld [vmem:[%s1 + $0x50] sm:$0xff]
      %v200 = vld [vmem:[%s1 + $0x58] sm:$0xff]
      %v201 = vld [vmem:[%s1 + $0x60] sm:$0xff]
      %v202 = vld [vmem:[%s1 + $0x68] sm:$0xff]
      %v203 = vld [vmem:[%s1 + $0x70] sm:$0xff]
      %v204 = vld [vmem:[%s1 + $0x78] sm:$0xff]
      %v205 = vld [vmem:[%s1 + $0x80] sm:$0xff]
      %v206 = vld [vmem:[%s1 + $0x88] sm:$0xff]
      %v207 = vld [vmem:[%s1 + $0x90] sm:$0xff]
      %v208 = vld [vmem:[%s1 + $0x98] sm:$0xff]
      %v209 = vld [vmem:[%s1 + $0xa0] sm:$0xff]
      %v210 = vld [vmem:[%s1 + $0xa8] sm:$0xff]
      %v211 = vld [vmem:[%s1 + $0xb0] sm:$0xff]
      %v212 = vld [vmem:[%s1 + $0xb8] sm:$0xff]
      %v213 = vld [vmem:[%s1 + $0xc0] sm:$0xff]
      %v214 = vld [vmem:[%s1 + $0xc8] sm:$0xff]
      %v215 = vld [vmem:[%s1 + $0xd0] sm:$0xff]
      %v216 = vld [vmem:[%s1 + $0xd8] sm:$0xff]
      %v217 = vld [vmem:[%s1 + $0xe0] sm:$0xff]
      %v218 = vld [vmem:[%s1 + $0xe8] sm:$0xff]
      %v219 = vld [vmem:[%s1 + $0xf0] sm:$0xff]
      %v220 = vld [vmem:[%s1 + $0xf8] sm:$0xff]
      %v221 = vld [vmem:[%s1 + $0x100] sm:$0xff]
      %v222 = vld [vmem:[%s1 + $0x108] sm:$0xff]
      %v223 = vld [vmem:[%s1 + $0x110] sm:$0xff]
      %v224 = vld [vmem:[%s1 + $0x118] sm:$0xff]
      %v225 = vld [vmem:[%s1 + $0x120] sm:$0xff]
      %v226 = vld [vmem:[%s1 + $0x128] sm:$0xff]
      %v227 = vld [vmem:[%s1 + $0x130] sm:$0xff]
      %v228 = vld [vmem:[%s1 + $0x138] sm:$0xff]
      %v229 = vld [vmem:[%s1 + $0x140] sm:$0xff]
      %v230 = vld [vmem:[%s1 + $0x148] sm:$0xff]
      %v231 = vld [vmem:[%s1 + $0x150] sm:$0xff]
      %v232 = vld [vmem:[%s1 + $0x158] sm:$0xff]
      %v233 = vld [vmem:[%s1 + $0x160] sm:$0xff]
      %v234 = vld [vmem:[%s1 + $0x168] sm:$0xff]
      %v235 = vld [vmem:[%s1 + $0x170] sm:$0xff]
      %v236 = vld [vmem:[%s1 + $0x178] sm:$0xff]
      %v237 = vld [vmem:[%s1 + $0x180] sm:$0xff]
      %v238 = vld [vmem:[%s1 + $0x188] sm:$0xff]
      %v239 = vld [vmem:[%s1 + $0x190] sm:$0xff]
      %v240 = vld [vmem:[%s1 + $0x198] sm:$0xff]
      %v241 = vld [vmem:[%s1 + $0x1a0] sm:$0xff]
      %v242 = vld [vmem:[%s1 + $0x1a8] sm:$0xff]
      %v243 = vld [vmem:[%s1 + $0x1b0] sm:$0xff]
      %v244 = vld [vmem:[%s1 + $0x1b8] sm:$0xff]
      %v245 = vld [vmem:[%s1 + $0x1c0] sm:$0xff]
      %v246 = vld [vmem:[%s1 + $0x1c8] sm:$0xff]
      %v247 = vld [vmem:[%s1 + $0x1d0] sm:$0xff]
      %v248 = vld [vmem:[%s1 + $0x1d8] sm:$0xff]
      %v249 = vld [vmem:[%s1 + $0x1e0] sm:$0xff]
      %v250 = vld [vmem:[%s1 + $0x1e8] sm:$0xff]
      %v251 = vld [vmem:[%s1 + $0x1f0] sm:$0xff]
      %v252 = vld [vmem:[%s1 + $0x1f8] sm:$0xff]
      %v253 = vld [vmem:[%s1 + $0x200] sm:$0xff]
      %v254 = vld [vmem:[%s1 + $0x208] sm:$0xff]
      %v255 = vld [vmem:[%s1 + $0x210] sm:$0xff]
      %v256 = vld [vmem:[%s1 + $0x218] sm:$0xff]
      %v257 = vld [vmem:[%s1 + $0x220] sm:$0xff]
      %v258 = vld [vmem:[%s1 + $0x228] sm:$0xff]
      %v259 = vld [vmem:[%s1 + $0x230] sm:$0xff]
      %v260 = vld [vmem:[%s1 + $0x238] sm:$0xff]
      %v261 = vld [vmem:[%s1 + $0x240] sm:$0xff]
      %v262 = vld [vmem:[%s1 + $0x248] sm:$0xff]
      %v263 = vld [vmem:[%s1 + $0x250] sm:$0xff]
      %v264 = vld [vmem:[%s1 + $0x258] sm:$0xff]
      %v265 = vld [vmem:[%s1 + $0x260] sm:$0xff]
      %v266 = vld [vmem:[%s1 + $0x268] sm:$0xff]
      %v267 = vld [vmem:[%s1 + $0x270] sm:$0xff]
      %v268 = vld [vmem:[%s1 + $0x278] sm:$0xff]
      %v269 = vld [vmem:[%s1 + $0x280] sm:$0xff]
      %v270 = vld [vmem:[%s1 + $0x288] sm:$0xff]
      %v271 = vld [vmem:[%s1 + $0x290] sm:$0xff]
      %v272 = vld [vmem:[%s1 + $0x298] sm:$0xff]
      %v273 = vld [vmem:[%s1 + $0x2a0] sm:$0xff]
      %v274 = vld [vmem:[%s1 + $0x2a8] sm:$0xff]
      %v275 = vld [vmem:[%s1 + $0x2b0] sm:$0xff]
      %v276 = vld [vmem:[%s1 + $0x2b8] sm:$0xff]
      %v277 = vld [vmem:[%s1 + $0x2c0] sm:$0xff]
      %v278 = vld [vmem:[%s1 + $0x2c8] sm:$0xff]
      %v279 = vld [vmem:[%s1 + $0x2d0] sm:$0xff]
      %v280 = vld [vmem:[%s1 + $0x2d8] sm:$0xff]
      %v281 = vld [vmem:[%s1 + $0x2e0] sm:$0xff]
      %v282 = vld [vmem:[%s1 + $0x2e8] sm:$0xff]
      %v283 = vld [vmem:[%s1 + $0x2f0] sm:$0xff]
      %v284 = vld [vmem:[%s1 + $0x2f8] sm:$0xff]
      %v285 = vld [vmem:[%s1 + $0x300] sm:$0xff]
      %v286 = vld [vmem:[%s1 + $0x308] sm:$0xff]
      %v287 = vld [vmem:[%s1 + $0x310] sm:$0xff]
      %v288 = vld [vmem:[%s1 + $0x318] sm:$0xff]
      %v289 = vld [vmem:[%s1 + $0x320] sm:$0xff]
      %v290 = vld [vmem:[%s1 + $0x328] sm:$0xff]
      %v291 = vld [vmem:[%s1 + $0x330] sm:$0xff]
      %v292 = vld [vmem:[%s1 + $0x338] sm:$0xff]
      %v293 = vld [vmem:[%s1 + $0x340] sm:$0xff]
      %v294 = vld [vmem:[%s1 + $0x348] sm:$0xff]
      %v295 = vld [vmem:[%s1 + $0x350] sm:$0xff]
      %v296 = vld [vmem:[%s1 + $0x358] sm:$0xff]
      %v297 = vld [vmem:[%s1 + $0x360] sm:$0xff]
      %v298 = vld [vmem:[%s1 + $0x368] sm:$0xff]
      %v299 = vld [vmem:[%s1 + $0x370] sm:$0xff]
      %v300 = vld [vmem:[%s1 + $0x378] sm:$0xff]
      %v301 = vld [vmem:[%s1 + $0x380] sm:$0xff]
      %v302 = vld [vmem:[%s1 + $0x388] sm:$0xff]
      %v303 = vld [vmem:[%s1 + $0x390] sm:$0xff]
      %v304 = vld [vmem:[%s1 + $0x398] sm:$0xff]
      %v305 = vld [vmem:[%s1 + $0x3a0] sm:$0xff]
      %v306 = vld [vmem:[%s1 + $0x3a8] sm:$0xff]
      %v307 = vld [vmem:[%s1 + $0x3b0] sm:$0xff]
      %v308 = vld [vmem:[%s1 + $0x3b8] sm:$0xff]
      %v309 = vld [vmem:[%s1 + $0x3c0] sm:$0xff]
      %v310 = vld [vmem:[%s1 + $0x3c8] sm:$0xff]
      %v311 = vld [vmem:[%s1 + $0x3d0] sm:$0xff]
      %v312 = vld [vmem:[%s1 + $0x3d8] sm:$0xff]
      %v313 = vld [vmem:[%s1 + $0x3e0] sm:$0xff]
      %v314 = vld [vmem:[%s1 + $0x3e8] sm:$0xff]
      %v315 = vld [vmem:[%s1 + $0x3f0] sm:$0xff]
      %v316 = vld [vmem:[%s1 + $0x3f8] sm:$0xff]
      %v317 = vld [vmem:[%s1 + $0x400] sm:$0xff]
      %v318 = vld [vmem:[%s1 + $0x408] sm:$0xff]
      %v319 = vld [vmem:[%s1 + $0x410] sm:$0xff]
      %v320 = vld [vmem:[%s1 + $0x418] sm:$0xff]
      %v321 = vld [vmem:[%s1 + $0x420] sm:$0xff]
      %v322 = vld [vmem:[%s1 + $0x428] sm:$0xff]
      %v323 = vld [vmem:[%s1 + $0x430] sm:$0xff]
      %v324 = vld [vmem:[%s1 + $0x438] sm:$0xff]
      %v325 = vld [vmem:[%s1 + $0x440] sm:$0xff]
      %v326 = vld [vmem:[%s1 + $0x448] sm:$0xff]
      %v327 = vld [vmem:[%s1 + $0x450] sm:$0xff]
      %v328 = vld [vmem:[%s1 + $0x458] sm:$0xff]
      %v329 = vld [vmem:[%s1 + $0x460] sm:$0xff]
      %v330 = vld [vmem:[%s1 + $0x468] sm:$0xff]
      %v331 = vld [vmem:[%s1 + $0x470] sm:$0xff]
      %v332 = vld [vmem:[%s1 + $0x478] sm:$0xff]
      %v333 = vld [vmem:[%s173] sm:$0xfe]
      %v334 = vld [vmem:[%s173 + $0x8] sm:$0xfe]
      %v335 = vld [vmem:[%s173 + $0x10] sm:$0xfe]
      %v336 = vld [vmem:[%s173 + $0x18] sm:$0xfe]
      %v337 = vld [vmem:[%s173 + $0x20] sm:$0xfe]
      %v338 = vld [vmem:[%s173 + $0x28] sm:$0x1]
      %v339 = vld [vmem:[%s173 + $0x30] sm:$0x1]
      %v340 = vld [vmem:[%s173 + $0x38] sm:$0x1]
      %v341 = vld [vmem:[%s173 + $0x40] sm:$0x1]
      %v342 = vld [vmem:[%s173 + $0x48] sm:$0x1]
      %s343 = scalar_lea.vmem %s1, 1152
      %v344 = vld [vmem:[%s343] sm:$0xff]
      %v345 = vld [vmem:[%s343 + $0x8] sm:$0xff]
      %v346 = vld [vmem:[%s343 + $0x10] sm:$0xff]
      %v347 = vld [vmem:[%s343 + $0x18] sm:$0xff]
      %v348 = vld [vmem:[%s343 + $0x20] sm:$0xff]
      %v349 = vld [vmem:[%s343 + $0x28] sm:$0xff]
      %v350 = vld [vmem:[%s343 + $0x30] sm:$0xff]
      %v351 = vld [vmem:[%s343 + $0x38] sm:$0xff]
      %v352 = vld [vmem:[%s343 + $0x40] sm:$0xff]
      %v353 = vld [vmem:[%s343 + $0x48] sm:$0xff]
      %v354 = vld [vmem:[%s343 + $0x50] sm:$0xff]
      %v355 = vld [vmem:[%s343 + $0x58] sm:$0xff]
      %v356 = vld [vmem:[%s343 + $0x60] sm:$0xff]
      %v357 = vld [vmem:[%s343 + $0x68] sm:$0xff]
      %v358 = vld [vmem:[%s343 + $0x70] sm:$0xff]
      %v359 = vld [vmem:[%s343 + $0x78] sm:$0xff]
      %v360 = vld [vmem:[%s343 + $0x80] sm:$0xff]
      %v361 = vld [vmem:[%s343 + $0x88] sm:$0xff]
      %v362 = vld [vmem:[%s343 + $0x90] sm:$0xff]
      %v363 = vld [vmem:[%s343 + $0x98] sm:$0xff]
      %v364 = vld [vmem:[%s343 + $0xa0] sm:$0xff]
      %v365 = vld [vmem:[%s343 + $0xa8] sm:$0xff]
      %v366 = vld [vmem:[%s343 + $0xb0] sm:$0xff]
      %v367 = vld [vmem:[%s343 + $0xb8] sm:$0xff]
      %v368 = vld [vmem:[%s343 + $0xc0] sm:$0xff]
      %v369 = vld [vmem:[%s343 + $0xc8] sm:$0xff]
      %v370 = vld [vmem:[%s343 + $0xd0] sm:$0xff]
      %v371 = vld [vmem:[%s343 + $0xd8] sm:$0xff]
      %v372 = vld [vmem:[%s343 + $0xe0] sm:$0xff]
      %v373 = vld [vmem:[%s343 + $0xe8] sm:$0xff]
      %v374 = vld [vmem:[%s343 + $0xf0] sm:$0xff]
      %v375 = vld [vmem:[%s343 + $0xf8] sm:$0xff]
      %v376 = vld [vmem:[%s343 + $0x100] sm:$0xff]
      %v377 = vld [vmem:[%s343 + $0x108] sm:$0xff]
      %v378 = vld [vmem:[%s343 + $0x110] sm:$0xff]
      %v379 = vld [vmem:[%s343 + $0x118] sm:$0xff]
      %v380 = vld [vmem:[%s343 + $0x120] sm:$0xff]
      %v381 = vld [vmem:[%s343 + $0x128] sm:$0xff]
      %v382 = vld [vmem:[%s343 + $0x130] sm:$0xff]
      %v383 = vld [vmem:[%s343 + $0x138] sm:$0xff]
      %v384 = vld [vmem:[%s343 + $0x140] sm:$0xff]
      %v385 = vld [vmem:[%s343 + $0x148] sm:$0xff]
      %v386 = vld [vmem:[%s343 + $0x150] sm:$0xff]
      %v387 = vld [vmem:[%s343 + $0x158] sm:$0xff]
      %v388 = vld [vmem:[%s343 + $0x160] sm:$0xff]
      %v389 = vld [vmem:[%s343 + $0x168] sm:$0xff]
      %v390 = vld [vmem:[%s343 + $0x170] sm:$0xff]
      %v391 = vld [vmem:[%s343 + $0x178] sm:$0xff]
      %v392 = vld [vmem:[%s343 + $0x180] sm:$0xff]
      %v393 = vld [vmem:[%s343 + $0x188] sm:$0xff]
      %v394 = vld [vmem:[%s343 + $0x190] sm:$0xff]
      %v395 = vld [vmem:[%s343 + $0x198] sm:$0xff]
      %v396 = vld [vmem:[%s343 + $0x1a0] sm:$0xff]
      %v397 = vld [vmem:[%s343 + $0x1a8] sm:$0xff]
      %v398 = vld [vmem:[%s343 + $0x1b0] sm:$0xff]
      %v399 = vld [vmem:[%s343 + $0x1b8] sm:$0xff]
      %v400 = vld [vmem:[%s343 + $0x1c0] sm:$0xff]
      %v401 = vld [vmem:[%s343 + $0x1c8] sm:$0xff]
      %v402 = vld [vmem:[%s343 + $0x1d0] sm:$0xff]
      %v403 = vld [vmem:[%s343 + $0x1d8] sm:$0xff]
      %v404 = vld [vmem:[%s343 + $0x1e0] sm:$0xff]
      %v405 = vld [vmem:[%s343 + $0x1e8] sm:$0xff]
      %v406 = vld [vmem:[%s343 + $0x1f0] sm:$0xff]
      %v407 = vld [vmem:[%s343 + $0x1f8] sm:$0xff]
      %v408 = vld [vmem:[%s343 + $0x200] sm:$0xff]
      %v409 = vld [vmem:[%s343 + $0x208] sm:$0xff]
      %v410 = vld [vmem:[%s343 + $0x210] sm:$0xff]
      %v411 = vld [vmem:[%s343 + $0x218] sm:$0xff]
      %v412 = vld [vmem:[%s343 + $0x220] sm:$0xff]
      %v413 = vld [vmem:[%s343 + $0x228] sm:$0xff]
      %v414 = vld [vmem:[%s343 + $0x230] sm:$0xff]
      %v415 = vld [vmem:[%s343 + $0x238] sm:$0xff]
      %v416 = vld [vmem:[%s343 + $0x240] sm:$0xff]
      %v417 = vld [vmem:[%s343 + $0x248] sm:$0xff]
      %v418 = vld [vmem:[%s343 + $0x250] sm:$0xff]
      %v419 = vld [vmem:[%s343 + $0x258] sm:$0xff]
      %v420 = vld [vmem:[%s343 + $0x260] sm:$0xff]
      %v421 = vld [vmem:[%s343 + $0x268] sm:$0xff]
      %v422 = vld [vmem:[%s343 + $0x270] sm:$0xff]
      %v423 = vld [vmem:[%s343 + $0x278] sm:$0xff]
      %v424 = vld [vmem:[%s343 + $0x280] sm:$0xff]
      %v425 = vld [vmem:[%s343 + $0x288] sm:$0xff]
      %v426 = vld [vmem:[%s343 + $0x290] sm:$0xff]
      %v427 = vld [vmem:[%s343 + $0x298] sm:$0xff]
      %v428 = vld [vmem:[%s343 + $0x2a0] sm:$0xff]
      %v429 = vld [vmem:[%s343 + $0x2a8] sm:$0xff]
      %v430 = vld [vmem:[%s343 + $0x2b0] sm:$0xff]
      %v431 = vld [vmem:[%s343 + $0x2b8] sm:$0xff]
      %v432 = vld [vmem:[%s343 + $0x2c0] sm:$0xff]
      %v433 = vld [vmem:[%s343 + $0x2c8] sm:$0xff]
      %v434 = vld [vmem:[%s343 + $0x2d0] sm:$0xff]
      %v435 = vld [vmem:[%s343 + $0x2d8] sm:$0xff]
      %v436 = vld [vmem:[%s343 + $0x2e0] sm:$0xff]
      %v437 = vld [vmem:[%s343 + $0x2e8] sm:$0xff]
      %v438 = vld [vmem:[%s343 + $0x2f0] sm:$0xff]
      %v439 = vld [vmem:[%s343 + $0x2f8] sm:$0xff]
      %v440 = vld [vmem:[%s343 + $0x300] sm:$0xff]
      %v441 = vld [vmem:[%s343 + $0x308] sm:$0xff]
      %v442 = vld [vmem:[%s343 + $0x310] sm:$0xff]
      %v443 = vld [vmem:[%s343 + $0x318] sm:$0xff]
      %v444 = vld [vmem:[%s343 + $0x320] sm:$0xff]
      %v445 = vld [vmem:[%s343 + $0x328] sm:$0xff]
      %v446 = vld [vmem:[%s343 + $0x330] sm:$0xff]
      %v447 = vld [vmem:[%s343 + $0x338] sm:$0xff]
      %v448 = vld [vmem:[%s343 + $0x340] sm:$0xff]
      %v449 = vld [vmem:[%s343 + $0x348] sm:$0xff]
      %v450 = vld [vmem:[%s343 + $0x350] sm:$0xff]
      %v451 = vld [vmem:[%s343 + $0x358] sm:$0xff]
      %v452 = vld [vmem:[%s343 + $0x360] sm:$0xff]
      %v453 = vld [vmem:[%s343 + $0x368] sm:$0xff]
      %v454 = vld [vmem:[%s343 + $0x370] sm:$0xff]
      %v455 = vld [vmem:[%s343 + $0x378] sm:$0xff]
      %v456 = vld [vmem:[%s343 + $0x380] sm:$0xff]
      %v457 = vld [vmem:[%s343 + $0x388] sm:$0xff]
      %v458 = vld [vmem:[%s343 + $0x390] sm:$0xff]
      %v459 = vld [vmem:[%s343 + $0x398] sm:$0xff]
      %v460 = vld [vmem:[%s343 + $0x3a0] sm:$0xff]
      %v461 = vld [vmem:[%s343 + $0x3a8] sm:$0xff]
      %v462 = vld [vmem:[%s343 + $0x3b0] sm:$0xff]
      %v463 = vld [vmem:[%s343 + $0x3b8] sm:$0xff]
      %v464 = vld [vmem:[%s343 + $0x3c0] sm:$0xff]
      %v465 = vld [vmem:[%s343 + $0x3c8] sm:$0xff]
      %v466 = vld [vmem:[%s343 + $0x3d0] sm:$0xff]
      %v467 = vld [vmem:[%s343 + $0x3d8] sm:$0xff]
      %v468 = vld [vmem:[%s343 + $0x3e0] sm:$0xff]
      %v469 = vld [vmem:[%s343 + $0x3e8] sm:$0xff]
      %v470 = vld [vmem:[%s343 + $0x3f0] sm:$0xff]
      %v471 = vld [vmem:[%s343 + $0x3f8] sm:$0xff]
      %v472 = vld [vmem:[%s343 + $0x400] sm:$0xff]
      %v473 = vld [vmem:[%s343 + $0x408] sm:$0xff]
      %v474 = vld [vmem:[%s343 + $0x410] sm:$0xff]
      %v475 = vld [vmem:[%s343 + $0x418] sm:$0xff]
      %v476 = vld [vmem:[%s343 + $0x420] sm:$0xff]
      %v477 = vld [vmem:[%s343 + $0x428] sm:$0xff]
      %v478 = vld [vmem:[%s343 + $0x430] sm:$0xff]
      %v479 = vld [vmem:[%s343 + $0x438] sm:$0xff]
      %v480 = vld [vmem:[%s343 + $0x440] sm:$0xff]
      %v481 = vld [vmem:[%s343 + $0x448] sm:$0xff]
      %v482 = vld [vmem:[%s343 + $0x450] sm:$0xff]
      %v483 = vld [vmem:[%s343 + $0x458] sm:$0xff]
      %v484 = vld [vmem:[%s343 + $0x460] sm:$0xff]
      %v485 = vld [vmem:[%s343 + $0x468] sm:$0xff]
      %v486 = vld [vmem:[%s343 + $0x470] sm:$0xff]
      %v487 = vld [vmem:[%s343 + $0x478] sm:$0xff]
      %vm498 = vcmask 1046528
      %v499 = vrot.slane %v333, 1
      %v500 = vrot.slane %v338, 1
      %v501 = vsel %vm498, %v499, %v500
      %v502 = vrot.slane %v334, 1
      %v503 = vrot.slane %v339, 1
      %v504 = vsel %vm498, %v502, %v503
      %v505 = vrot.slane %v335, 1
      %v506 = vrot.slane %v340, 1
      %v507 = vsel %vm498, %v505, %v506
      %v508 = vrot.slane %v336, 1
      %v509 = vrot.slane %v341, 1
      %v510 = vsel %vm498, %v508, %v509
      %v511 = vrot.slane %v337, 1
      %v512 = vrot.slane %v342, 1
      %v513 = vsel %vm498, %v511, %v512
      %vm518 = vcmask 523264
      %v519 = vsel %vm518, %v513, 0
      %521 = vmatprep.subr.mxu0 %v345
      %522 = vmatpush1.msra.mxu0 %v344
      %523 = vmatprep.subr.mxu0 %v347
      %524 = vmatpush1.msra.mxu0 %v346
      %525 = vmatprep.subr.mxu0 %v349
      %526 = vmatpush1.msra.mxu0 %v348
      %527 = vmatprep.subr.mxu0 %v351
      %528 = vmatpush1.msra.mxu0 %v350
      %529 = vmatprep.subr.mxu0 %v353
      %530 = vmatpush1.msra.mxu0 %v352
      %531 = vmatprep.subr.mxu0 %v355
      %532 = vmatpush1.msra.mxu0 %v354
      %533 = vmatprep.subr.mxu0 %v357
      %534 = vmatpush1.msra.mxu0 %v356
      %535 = vmatprep.subr.mxu0 %v359
      %536 = vmatpush1.msra.mxu0 %v358
      %537 = vmatprep.subr.mxu0 %v361
      %538 = vmatpush1.msra.mxu0 %v360
      %539 = vmatprep.subr.mxu0 %v363
      %540 = vmatpush1.msra.mxu0 %v362
      %541 = vmatprep.subr.mxu0 %v365
      %542 = vmatpush1.msra.mxu0 %v364
      %543 = vmatprep.subr.mxu0 %v367
      %544 = vmatpush1.msra.mxu0 %v366
      %545 = vmatprep.subr.mxu0 %v369
      %546 = vmatpush1.msra.mxu0 %v368
      %547 = vmatprep.subr.mxu0 %v371
      %548 = vmatpush1.msra.mxu0 %v370
      %549 = vmatprep.subr.mxu0 %v373
      %550 = vmatpush1.msra.mxu0 %v372
      %551 = vmatprep.subr.mxu0 %v375
      %552 = vmatpush1.msra.mxu0 %v374
      %553 = vmatprep.subr.mxu0 %v377
      %554 = vmatpush1.msra.mxu0 %v376
      %555 = vmatprep.subr.mxu0 %v379
      %556 = vmatpush1.msra.mxu0 %v378
      %557 = vmatprep.subr.mxu0 %v381
      %558 = vmatpush1.msra.mxu0 %v380
      %559 = vmatprep.subr.mxu0 %v383
      %560 = vmatpush1.msra.mxu0 %v382
      %561 = vmatprep.subr.mxu0 %v385
      %562 = vmatpush1.msra.mxu0 %v384
      %563 = vmatprep.subr.mxu0 %v387
      %564 = vmatpush1.msra.mxu0 %v386
      %565 = vmatprep.subr.mxu0 %v389
      %566 = vmatpush1.msra.mxu0 %v388
      %567 = vmatprep.subr.mxu0 %v391
      %568 = vmatpush1.msra.mxu0 %v390
      %569 = vmatprep.subr.mxu0 %v393
      %570 = vmatpush1.msra.mxu0 %v392
      %571 = vmatprep.subr.mxu0 %v395
      %572 = vmatpush1.msra.mxu0 %v394
      %573 = vmatprep.subr.mxu0 %v397
      %574 = vmatpush1.msra.mxu0 %v396
      %575 = vmatprep.subr.mxu0 %v399
      %576 = vmatpush1.msra.mxu0 %v398
      %577 = vmatprep.subr.mxu0 %v401
      %578 = vmatpush1.msra.mxu0 %v400
      %579 = vmatprep.subr.mxu0 %v403
      %580 = vmatpush1.msra.mxu0 %v402
      %581 = vmatprep.subr.mxu0 %v405
      %582 = vmatpush1.msra.mxu0 %v404
      %583 = vmatprep.subr.mxu0 %v407
      %584 = vmatpush1.msra.mxu0 %v406
      %585 = vmatprep.mubr.f32.mxu0 %v504
      %586 = vmatmul.mubr.f32.gmra.mrb[0].mxu0 %v501
      %v587 = vpop.f32.mrb[0].mxu0
      %v588 = vadd.f32 0.0, %v587
      %v589 = vpop.f32.mrb[0].mxu0
      %v590 = vadd.f32 0.0, %v589
      %591 = vdwg.mxu0
      %592 = vmatprep.subr.mxu0 %v409
      %593 = vmatpush1.msra.mxu0 %v408
      %594 = vmatprep.subr.mxu0 %v411
      %595 = vmatpush1.msra.mxu0 %v410
      %596 = vmatprep.subr.mxu0 %v413
      %597 = vmatpush1.msra.mxu0 %v412
      %598 = vmatprep.subr.mxu0 %v415
      %599 = vmatpush1.msra.mxu0 %v414
      %600 = vmatprep.subr.mxu0 %v417
      %601 = vmatpush1.msra.mxu0 %v416
      %602 = vmatprep.subr.mxu0 %v419
      %603 = vmatpush1.msra.mxu0 %v418
      %604 = vmatprep.subr.mxu0 %v421
      %605 = vmatpush1.msra.mxu0 %v420
      %606 = vmatprep.subr.mxu0 %v423
      %607 = vmatpush1.msra.mxu0 %v422
      %608 = vmatprep.subr.mxu0 %v425
      %609 = vmatpush1.msra.mxu0 %v424
      %610 = vmatprep.subr.mxu0 %v427
      %611 = vmatpush1.msra.mxu0 %v426
      %612 = vmatprep.subr.mxu0 %v429
      %613 = vmatpush1.msra.mxu0 %v428
      %614 = vmatprep.subr.mxu0 %v431
      %615 = vmatpush1.msra.mxu0 %v430
      %616 = vmatprep.subr.mxu0 %v433
      %617 = vmatpush1.msra.mxu0 %v432
      %618 = vmatprep.subr.mxu0 %v435
      %619 = vmatpush1.msra.mxu0 %v434
      %620 = vmatprep.subr.mxu0 %v437
      %621 = vmatpush1.msra.mxu0 %v436
      %622 = vmatprep.subr.mxu0 %v439
      %623 = vmatpush1.msra.mxu0 %v438
      %624 = vmatprep.subr.mxu0 %v441
      %625 = vmatpush1.msra.mxu0 %v440
      %626 = vmatprep.subr.mxu0 %v443
      %627 = vmatpush1.msra.mxu0 %v442
      %628 = vmatprep.subr.mxu0 %v445
      %629 = vmatpush1.msra.mxu0 %v444
      %630 = vmatprep.subr.mxu0 %v447
      %631 = vmatpush1.msra.mxu0 %v446
      %632 = vmatprep.subr.mxu0 %v449
      %633 = vmatpush1.msra.mxu0 %v448
      %634 = vmatprep.subr.mxu0 %v451
      %635 = vmatpush1.msra.mxu0 %v450
      %636 = vmatprep.subr.mxu0 %v453
      %637 = vmatpush1.msra.mxu0 %v452
      %638 = vmatprep.subr.mxu0 %v455
      %639 = vmatpush1.msra.mxu0 %v454
      %640 = vmatprep.subr.mxu0 %v457
      %641 = vmatpush1.msra.mxu0 %v456
      %642 = vmatprep.subr.mxu0 %v459
      %643 = vmatpush1.msra.mxu0 %v458
      %644 = vmatprep.subr.mxu0 %v461
      %645 = vmatpush1.msra.mxu0 %v460
      %646 = vmatprep.subr.mxu0 %v463
      %647 = vmatpush1.msra.mxu0 %v462
      %648 = vmatprep.subr.mxu0 %v465
      %649 = vmatpush1.msra.mxu0 %v464
      %650 = vmatprep.subr.mxu0 %v467
      %651 = vmatpush1.msra.mxu0 %v466
      %652 = vmatprep.subr.mxu0 %v469
      %653 = vmatpush1.msra.mxu0 %v468
      %654 = vmatprep.subr.mxu0 %v471
      %655 = vmatpush1.msra.mxu0 %v470
      %656 = vmatprep.mubr.f32.mxu0 %v510
      %657 = vmatmul.mubr.f32.gmra.mrb[0].mxu0 %v507
      %v658 = vpop.f32.mrb[0].mxu0
      %v659 = vadd.f32 %v588, %v658
      %v660 = vpop.f32.mrb[0].mxu0
      %v661 = vadd.f32 %v590, %v660
      %662 = vdwg.mxu0
      %663 = vmatprep.subr.mxu0 %v473
      %664 = vmatpush1.msra.mxu0 %v472
      %665 = vmatprep.subr.mxu0 %v475
      %666 = vmatpush1.msra.mxu0 %v474
      %667 = vmatprep.subr.mxu0 %v477
      %668 = vmatpush1.msra.mxu0 %v476
      %669 = vmatprep.subr.mxu0 %v479
      %670 = vmatpush1.msra.mxu0 %v478
      %671 = vmatprep.subr.mxu0 %v481
      %672 = vmatpush1.msra.mxu0 %v480
      %673 = vmatprep.subr.mxu0 %v483
      %674 = vmatpush1.msra.mxu0 %v482
      %675 = vmatprep.subr.mxu0 %v485
      %676 = vmatpush1.msra.mxu0 %v484
      %677 = vmatprep.subr.mxu0 %v487
      %678 = vmatpush1.msra.mxu0 %v486
      %679 = vmatprep.subr.mxu0 0.0
      %680 = vmatpush1.msra.mxu0 0.0
      %681 = vmatprep.subr.mxu0 0.0
      %682 = vmatpush1.msra.mxu0 0.0
      %683 = vmatprep.subr.mxu0 0.0
      %684 = vmatpush1.msra.mxu0 0.0
      %685 = vmatprep.subr.mxu0 0.0
      %686 = vmatpush1.msra.mxu0 0.0
      %687 = vmatprep.subr.mxu0 0.0
      %688 = vmatpush1.msra.mxu0 0.0
      %689 = vmatprep.subr.mxu0 0.0
      %690 = vmatpush1.msra.mxu0 0.0
      %691 = vmatprep.subr.mxu0 0.0
      %692 = vmatpush1.msra.mxu0 0.0
      %693 = vmatprep.subr.mxu0 0.0
      %694 = vmatpush1.msra.mxu0 0.0
      %695 = vmatprep.subr.mxu0 0.0
      %696 = vmatpush1.msra.mxu0 0.0
      %697 = vmatprep.subr.mxu0 0.0
      %698 = vmatpush1.msra.mxu0 0.0
      %699 = vmatprep.subr.mxu0 0.0
      %700 = vmatpush1.msra.mxu0 0.0
      %701 = vmatprep.subr.mxu0 0.0
      %702 = vmatpush1.msra.mxu0 0.0
      %703 = vmatprep.subr.mxu0 0.0
      %704 = vmatpush1.msra.mxu0 0.0
      %705 = vmatprep.subr.mxu0 0.0
      %706 = vmatpush1.msra.mxu0 0.0
      %707 = vmatprep.subr.mxu0 0.0
      %708 = vmatpush1.msra.mxu0 0.0
      %709 = vmatprep.subr.mxu0 0.0
      %710 = vmatpush1.msra.mxu0 0.0
      %711 = vmatprep.subr.mxu0 0.0
      %712 = vmatpush1.msra.mxu0 0.0
      %713 = vmatprep.subr.mxu0 0.0
      %714 = vmatpush1.msra.mxu0 0.0
      %715 = vmatprep.subr.mxu0 0.0
      %716 = vmatpush1.msra.mxu0 0.0
      %717 = vmatprep.subr.mxu0 0.0
      %718 = vmatpush1.msra.mxu0 0.0
      %719 = vmatprep.subr.mxu0 0.0
      %720 = vmatpush1.msra.mxu0 0.0
      %721 = vmatprep.subr.mxu0 0.0
      %722 = vmatpush1.msra.mxu0 0.0
      %723 = vmatprep.subr.mxu0 0.0
      %724 = vmatpush1.msra.mxu0 0.0
      %725 = vmatprep.subr.mxu0 0.0
      %726 = vmatpush1.msra.mxu0 0.0
      %727 = vmatprep.mubr.f32.mxu0 0.0
      %728 = vmatmul.mubr.f32.gmra.mrb[0].mxu0 %v519
      %v729 = vpop.f32.mrb[0].mxu0
      %v730 = vadd.f32 %v659, %v729
      %v731 = vpop.f32.mrb[0].mxu0
      %v732 = vadd.f32 %v661, %v731
      %733 = vdwg.mxu0
      %v735 = vsel %vm518, %v188, 0
      %737 = vmatprep.subr.mxu0 %v190
      %738 = vmatpush1.msra.mxu0 %v189
      %739 = vmatprep.subr.mxu0 %v192
      %740 = vmatpush1.msra.mxu0 %v191
      %741 = vmatprep.subr.mxu0 %v194
      %742 = vmatpush1.msra.mxu0 %v193
      %743 = vmatprep.subr.mxu0 %v196
      %744 = vmatpush1.msra.mxu0 %v195
      %745 = vmatprep.subr.mxu0 %v198
      %746 = vmatpush1.msra.mxu0 %v197
      %747 = vmatprep.subr.mxu0 %v200
      %748 = vmatpush1.msra.mxu0 %v199
      %749 = vmatprep.subr.mxu0 %v202
      %750 = vmatpush1.msra.mxu0 %v201
      %751 = vmatprep.subr.mxu0 %v204
      %752 = vmatpush1.msra.mxu0 %v203
      %753 = vmatprep.subr.mxu0 %v206
      %754 = vmatpush1.msra.mxu0 %v205
      %755 = vmatprep.subr.mxu0 %v208
      %756 = vmatpush1.msra.mxu0 %v207
      %757 = vmatprep.subr.mxu0 %v210
      %758 = vmatpush1.msra.mxu0 %v209
      %759 = vmatprep.subr.mxu0 %v212
      %760 = vmatpush1.msra.mxu0 %v211
      %761 = vmatprep.subr.mxu0 %v214
      %762 = vmatpush1.msra.mxu0 %v213
      %763 = vmatprep.subr.mxu0 %v216
      %764 = vmatpush1.msra.mxu0 %v215
      %765 = vmatprep.subr.mxu0 %v218
      %766 = vmatpush1.msra.mxu0 %v217
      %767 = vmatprep.subr.mxu0 %v220
      %768 = vmatpush1.msra.mxu0 %v219
      %769 = vmatprep.subr.mxu0 %v222
      %770 = vmatpush1.msra.mxu0 %v221
      %771 = vmatprep.subr.mxu0 %v224
      %772 = vmatpush1.msra.mxu0 %v223
      %773 = vmatprep.subr.mxu0 %v226
      %774 = vmatpush1.msra.mxu0 %v225
      %775 = vmatprep.subr.mxu0 %v228
      %776 = vmatpush1.msra.mxu0 %v227
      %777 = vmatprep.subr.mxu0 %v230
      %778 = vmatpush1.msra.mxu0 %v229
      %779 = vmatprep.subr.mxu0 %v232
      %780 = vmatpush1.msra.mxu0 %v231
      %781 = vmatprep.subr.mxu0 %v234
      %782 = vmatpush1.msra.mxu0 %v233
      %783 = vmatprep.subr.mxu0 %v236
      %784 = vmatpush1.msra.mxu0 %v235
      %785 = vmatprep.subr.mxu0 %v238
      %786 = vmatpush1.msra.mxu0 %v237
      %787 = vmatprep.subr.mxu0 %v240
      %788 = vmatpush1.msra.mxu0 %v239
      %789 = vmatprep.subr.mxu0 %v242
      %790 = vmatpush1.msra.mxu0 %v241
      %791 = vmatprep.subr.mxu0 %v244
      %792 = vmatpush1.msra.mxu0 %v243
      %793 = vmatprep.subr.mxu0 %v246
      %794 = vmatpush1.msra.mxu0 %v245
      %795 = vmatprep.subr.mxu0 %v248
      %796 = vmatpush1.msra.mxu0 %v247
      %797 = vmatprep.subr.mxu0 %v250
      %798 = vmatpush1.msra.mxu0 %v249
      %799 = vmatprep.subr.mxu0 %v252
      %800 = vmatpush1.msra.mxu0 %v251
      %801 = vmatprep.mubr.f32.mxu0 %v185
      %802 = vmatmul.mubr.f32.gmra.mrb[0].mxu0 %v184
      %v803 = vpop.f32.mrb[0].mxu0
      %v804 = vadd.f32 %v730, %v803
      %v805 = vpop.f32.mrb[0].mxu0
      %v806 = vadd.f32 %v732, %v805
      %807 = vdwg.mxu0
      %808 = vmatprep.subr.mxu0 %v254
      %809 = vmatpush1.msra.mxu0 %v253
      %810 = vmatprep.subr.mxu0 %v256
      %811 = vmatpush1.msra.mxu0 %v255
      %812 = vmatprep.subr.mxu0 %v258
      %813 = vmatpush1.msra.mxu0 %v257
      %814 = vmatprep.subr.mxu0 %v260
      %815 = vmatpush1.msra.mxu0 %v259
      %816 = vmatprep.subr.mxu0 %v262
      %817 = vmatpush1.msra.mxu0 %v261
      %818 = vmatprep.subr.mxu0 %v264
      %819 = vmatpush1.msra.mxu0 %v263
      %820 = vmatprep.subr.mxu0 %v266
      %821 = vmatpush1.msra.mxu0 %v265
      %822 = vmatprep.subr.mxu0 %v268
      %823 = vmatpush1.msra.mxu0 %v267
      %824 = vmatprep.subr.mxu0 %v270
      %825 = vmatpush1.msra.mxu0 %v269
      %826 = vmatprep.subr.mxu0 %v272
      %827 = vmatpush1.msra.mxu0 %v271
      %828 = vmatprep.subr.mxu0 %v274
      %829 = vmatpush1.msra.mxu0 %v273
      %830 = vmatprep.subr.mxu0 %v276
      %831 = vmatpush1.msra.mxu0 %v275
      %832 = vmatprep.subr.mxu0 %v278
      %833 = vmatpush1.msra.mxu0 %v277
      %834 = vmatprep.subr.mxu0 %v280
      %835 = vmatpush1.msra.mxu0 %v279
      %836 = vmatprep.subr.mxu0 %v282
      %837 = vmatpush1.msra.mxu0 %v281
      %838 = vmatprep.subr.mxu0 %v284
      %839 = vmatpush1.msra.mxu0 %v283
      %840 = vmatprep.subr.mxu0 %v286
      %841 = vmatpush1.msra.mxu0 %v285
      %842 = vmatprep.subr.mxu0 %v288
      %843 = vmatpush1.msra.mxu0 %v287
      %844 = vmatprep.subr.mxu0 %v290
      %845 = vmatpush1.msra.mxu0 %v289
      %846 = vmatprep.subr.mxu0 %v292
      %847 = vmatpush1.msra.mxu0 %v291
      %848 = vmatprep.subr.mxu0 %v294
      %849 = vmatpush1.msra.mxu0 %v293
      %850 = vmatprep.subr.mxu0 %v296
      %851 = vmatpush1.msra.mxu0 %v295
      %852 = vmatprep.subr.mxu0 %v298
      %853 = vmatpush1.msra.mxu0 %v297
      %854 = vmatprep.subr.mxu0 %v300
      %855 = vmatpush1.msra.mxu0 %v299
      %856 = vmatprep.subr.mxu0 %v302
      %857 = vmatpush1.msra.mxu0 %v301
      %858 = vmatprep.subr.mxu0 %v304
      %859 = vmatpush1.msra.mxu0 %v303
      %860 = vmatprep.subr.mxu0 %v306
      %861 = vmatpush1.msra.mxu0 %v305
      %862 = vmatprep.subr.mxu0 %v308
      %863 = vmatpush1.msra.mxu0 %v307
      %864 = vmatprep.subr.mxu0 %v310
      %865 = vmatpush1.msra.mxu0 %v309
      %866 = vmatprep.subr.mxu0 %v312
      %867 = vmatpush1.msra.mxu0 %v311
      %868 = vmatprep.subr.mxu0 %v314
      %869 = vmatpush1.msra.mxu0 %v313
      %870 = vmatprep.subr.mxu0 %v316
      %871 = vmatpush1.msra.mxu0 %v315
      %872 = vmatprep.mubr.f32.mxu0 %v187
      %873 = vmatmul.mubr.f32.gmra.mrb[0].mxu0 %v186
      %v874 = vpop.f32.mrb[0].mxu0
      %v875 = vadd.f32 %v804, %v874
      %v876 = vpop.f32.mrb[0].mxu0
      %v877 = vadd.f32 %v806, %v876
      %878 = vdwg.mxu0
      %879 = vmatprep.subr.mxu0 %v318
      %880 = vmatpush1.msra.mxu0 %v317
      %881 = vmatprep.subr.mxu0 %v320
      %882 = vmatpush1.msra.mxu0 %v319
      %883 = vmatprep.subr.mxu0 %v322
      %884 = vmatpush1.msra.mxu0 %v321
      %885 = vmatprep.subr.mxu0 %v324
      %886 = vmatpush1.msra.mxu0 %v323
      %887 = vmatprep.subr.mxu0 %v326
      %888 = vmatpush1.msra.mxu0 %v325
      %889 = vmatprep.subr.mxu0 %v328
      %890 = vmatpush1.msra.mxu0 %v327
      %891 = vmatprep.subr.mxu0 %v330
      %892 = vmatpush1.msra.mxu0 %v329
      %893 = vmatprep.subr.mxu0 %v332
      %894 = vmatpush1.msra.mxu0 %v331
      %895 = vmatprep.subr.mxu0 0.0
      %896 = vmatpush1.msra.mxu0 0.0
      %897 = vmatprep.subr.mxu0 0.0
      %898 = vmatpush1.msra.mxu0 0.0
      %899 = vmatprep.subr.mxu0 0.0
      %900 = vmatpush1.msra.mxu0 0.0
      %901 = vmatprep.subr.mxu0 0.0
      %902 = vmatpush1.msra.mxu0 0.0
      %903 = vmatprep.subr.mxu0 0.0
      %904 = vmatpush1.msra.mxu0 0.0
      %905 = vmatprep.subr.mxu0 0.0
      %906 = vmatpush1.msra.mxu0 0.0
      %907 = vmatprep.subr.mxu0 0.0
      %908 = vmatpush1.msra.mxu0 0.0
      %909 = vmatprep.subr.mxu0 0.0
      %910 = vmatpush1.msra.mxu0 0.0
      %911 = vmatprep.subr.mxu0 0.0
      %912 = vmatpush1.msra.mxu0 0.0
      %913 = vmatprep.subr.mxu0 0.0
      %914 = vmatpush1.msra.mxu0 0.0
      %915 = vmatprep.subr.mxu0 0.0
      %916 = vmatpush1.msra.mxu0 0.0
      %917 = vmatprep.subr.mxu0 0.0
      %918 = vmatpush1.msra.mxu0 0.0
      %919 = vmatprep.subr.mxu0 0.0
      %920 = vmatpush1.msra.mxu0 0.0
      %921 = vmatprep.subr.mxu0 0.0
      %922 = vmatpush1.msra.mxu0 0.0
      %923 = vmatprep.subr.mxu0 0.0
      %924 = vmatpush1.msra.mxu0 0.0
      %925 = vmatprep.subr.mxu0 0.0
      %926 = vmatpush1.msra.mxu0 0.0
      %927 = vmatprep.subr.mxu0 0.0
      %928 = vmatpush1.msra.mxu0 0.0
      %929 = vmatprep.subr.mxu0 0.0
      %930 = vmatpush1.msra.mxu0 0.0
      %931 = vmatprep.subr.mxu0 0.0
      %932 = vmatpush1.msra.mxu0 0.0
      %933 = vmatprep.subr.mxu0 0.0
      %934 = vmatpush1.msra.mxu0 0.0
      %935 = vmatprep.subr.mxu0 0.0
      %936 = vmatpush1.msra.mxu0 0.0
      %937 = vmatprep.subr.mxu0 0.0
      %938 = vmatpush1.msra.mxu0 0.0
      %939 = vmatprep.subr.mxu0 0.0
      %940 = vmatpush1.msra.mxu0 0.0
      %941 = vmatprep.subr.mxu0 0.0
      %942 = vmatpush1.msra.mxu0 0.0
      %943 = vmatprep.mubr.f32.mxu0 0.0
      %944 = vmatmul.mubr.f32.gmra.mrb[0].mxu0 %v735
      %v945 = vpop.f32.mrb[0].mxu0
      %v946 = vadd.f32 %v875, %v945
      %v947 = vpop.f32.mrb[0].mxu0
      %v948 = vadd.f32 %v877, %v947
      %949 = vdwg.mxu0
      %v950 = vld [vmem:[%s173] sm:$0xfc]
      %v951 = vld [vmem:[%s173 + $0x8] sm:$0xfc]
      %v952 = vld [vmem:[%s173 + $0x10] sm:$0xfc]
      %v953 = vld [vmem:[%s173 + $0x18] sm:$0xfc]
      %v954 = vld [vmem:[%s173 + $0x20] sm:$0xfc]
      %v955 = vld [vmem:[%s173 + $0x28] sm:$0x3]
      %v956 = vld [vmem:[%s173 + $0x30] sm:$0x3]
      %v957 = vld [vmem:[%s173 + $0x38] sm:$0x3]
      %v958 = vld [vmem:[%s173 + $0x40] sm:$0x3]
      %v959 = vld [vmem:[%s173 + $0x48] sm:$0x3]
      %s960 = scalar_lea.vmem %s1, 2304
      %v961 = vld [vmem:[%s960] sm:$0xff]
      %v962 = vld [vmem:[%s960 + $0x8] sm:$0xff]
      %v963 = vld [vmem:[%s960 + $0x10] sm:$0xff]
      %v964 = vld [vmem:[%s960 + $0x18] sm:$0xff]
      %v965 = vld [vmem:[%s960 + $0x20] sm:$0xff]
      %v966 = vld [vmem:[%s960 + $0x28] sm:$0xff]
      %v967 = vld [vmem:[%s960 + $0x30] sm:$0xff]
      %v968 = vld [vmem:[%s960 + $0x38] sm:$0xff]
      %v969 = vld [vmem:[%s960 + $0x40] sm:$0xff]
      %v970 = vld [vmem:[%s960 + $0x48] sm:$0xff]
      %v971 = vld [vmem:[%s960 + $0x50] sm:$0xff]
      %v972 = vld [vmem:[%s960 + $0x58] sm:$0xff]
      %v973 = vld [vmem:[%s960 + $0x60] sm:$0xff]
      %v974 = vld [vmem:[%s960 + $0x68] sm:$0xff]
      %v975 = vld [vmem:[%s960 + $0x70] sm:$0xff]
      %v976 = vld [vmem:[%s960 + $0x78] sm:$0xff]
      %v977 = vld [vmem:[%s960 + $0x80] sm:$0xff]
      %v978 = vld [vmem:[%s960 + $0x88] sm:$0xff]
      %v979 = vld [vmem:[%s960 + $0x90] sm:$0xff]
      %v980 = vld [vmem:[%s960 + $0x98] sm:$0xff]
      %v981 = vld [vmem:[%s960 + $0xa0] sm:$0xff]
      %v982 = vld [vmem:[%s960 + $0xa8] sm:$0xff]
      %v983 = vld [vmem:[%s960 + $0xb0] sm:$0xff]
      %v984 = vld [vmem:[%s960 + $0xb8] sm:$0xff]
      %v985 = vld [vmem:[%s960 + $0xc0] sm:$0xff]
      %v986 = vld [vmem:[%s960 + $0xc8] sm:$0xff]
      %v987 = vld [vmem:[%s960 + $0xd0] sm:$0xff]
      %v988 = vld [vmem:[%s960 + $0xd8] sm:$0xff]
      %v989 = vld [vmem:[%s960 + $0xe0] sm:$0xff]
      %v990 = vld [vmem:[%s960 + $0xe8] sm:$0xff]
      %v991 = vld [vmem:[%s960 + $0xf0] sm:$0xff]
      %v992 = vld [vmem:[%s960 + $0xf8] sm:$0xff]
      %v993 = vld [vmem:[%s960 + $0x100] sm:$0xff]
      %v994 = vld [vmem:[%s960 + $0x108] sm:$0xff]
      %v995 = vld [vmem:[%s960 + $0x110] sm:$0xff]
      %v996 = vld [vmem:[%s960 + $0x118] sm:$0xff]
      %v997 = vld [vmem:[%s960 + $0x120] sm:$0xff]
      %v998 = vld [vmem:[%s960 + $0x128] sm:$0xff]
      %v999 = vld [vmem:[%s960 + $0x130] sm:$0xff]
      %v1000 = vld [vmem:[%s960 + $0x138] sm:$0xff]
      %v1001 = vld [vmem:[%s960 + $0x140] sm:$0xff]
      %v1002 = vld [vmem:[%s960 + $0x148] sm:$0xff]
      %v1003 = vld [vmem:[%s960 + $0x150] sm:$0xff]
      %v1004 = vld [vmem:[%s960 + $0x158] sm:$0xff]
      %v1005 = vld [vmem:[%s960 + $0x160] sm:$0xff]
      %v1006 = vld [vmem:[%s960 + $0x168] sm:$0xff]
      %v1007 = vld [vmem:[%s960 + $0x170] sm:$0xff]
      %v1008 = vld [vmem:[%s960 + $0x178] sm:$0xff]
      %v1009 = vld [vmem:[%s960 + $0x180] sm:$0xff]
      %v1010 = vld [vmem:[%s960 + $0x188] sm:$0xff]
      %v1011 = vld [vmem:[%s960 + $0x190] sm:$0xff]
      %v1012 = vld [vmem:[%s960 + $0x198] sm:$0xff]
      %v1013 = vld [vmem:[%s960 + $0x1a0] sm:$0xff]
      %v1014 = vld [vmem:[%s960 + $0x1a8] sm:$0xff]
      %v1015 = vld [vmem:[%s960 + $0x1b0] sm:$0xff]
      %v1016 = vld [vmem:[%s960 + $0x1b8] sm:$0xff]
      %v1017 = vld [vmem:[%s960 + $0x1c0] sm:$0xff]
      %v1018 = vld [vmem:[%s960 + $0x1c8] sm:$0xff]
      %v1019 = vld [vmem:[%s960 + $0x1d0] sm:$0xff]
      %v1020 = vld [vmem:[%s960 + $0x1d8] sm:$0xff]
      %v1021 = vld [vmem:[%s960 + $0x1e0] sm:$0xff]
      %v1022 = vld [vmem:[%s960 + $0x1e8] sm:$0xff]
      %v1023 = vld [vmem:[%s960 + $0x1f0] sm:$0xff]
      %v1024 = vld [vmem:[%s960 + $0x1f8] sm:$0xff]
      %v1025 = vld [vmem:[%s960 + $0x200] sm:$0xff]
      %v1026 = vld [vmem:[%s960 + $0x208] sm:$0xff]
      %v1027 = vld [vmem:[%s960 + $0x210] sm:$0xff]
      %v1028 = vld [vmem:[%s960 + $0x218] sm:$0xff]
      %v1029 = vld [vmem:[%s960 + $0x220] sm:$0xff]
      %v1030 = vld [vmem:[%s960 + $0x228] sm:$0xff]
      %v1031 = vld [vmem:[%s960 + $0x230] sm:$0xff]
      %v1032 = vld [vmem:[%s960 + $0x238] sm:$0xff]
      %v1033 = vld [vmem:[%s960 + $0x240] sm:$0xff]
      %v1034 = vld [vmem:[%s960 + $0x248] sm:$0xff]
      %v1035 = vld [vmem:[%s960 + $0x250] sm:$0xff]
      %v1036 = vld [vmem:[%s960 + $0x258] sm:$0xff]
      %v1037 = vld [vmem:[%s960 + $0x260] sm:$0xff]
      %v1038 = vld [vmem:[%s960 + $0x268] sm:$0xff]
      %v1039 = vld [vmem:[%s960 + $0x270] sm:$0xff]
      %v1040 = vld [vmem:[%s960 + $0x278] sm:$0xff]
      %v1041 = vld [vmem:[%s960 + $0x280] sm:$0xff]
      %v1042 = vld [vmem:[%s960 + $0x288] sm:$0xff]
      %v1043 = vld [vmem:[%s960 + $0x290] sm:$0xff]
      %v1044 = vld [vmem:[%s960 + $0x298] sm:$0xff]
      %v1045 = vld [vmem:[%s960 + $0x2a0] sm:$0xff]
      %v1046 = vld [vmem:[%s960 + $0x2a8] sm:$0xff]
      %v1047 = vld [vmem:[%s960 + $0x2b0] sm:$0xff]
      %v1048 = vld [vmem:[%s960 + $0x2b8] sm:$0xff]
      %v1049 = vld [vmem:[%s960 + $0x2c0] sm:$0xff]
      %v1050 = vld [vmem:[%s960 + $0x2c8] sm:$0xff]
      %v1051 = vld [vmem:[%s960 + $0x2d0] sm:$0xff]
      %v1052 = vld [vmem:[%s960 + $0x2d8] sm:$0xff]
      %v1053 = vld [vmem:[%s960 + $0x2e0] sm:$0xff]
      %v1054 = vld [vmem:[%s960 + $0x2e8] sm:$0xff]
      %v1055 = vld [vmem:[%s960 + $0x2f0] sm:$0xff]
      %v1056 = vld [vmem:[%s960 + $0x2f8] sm:$0xff]
      %v1057 = vld [vmem:[%s960 + $0x300] sm:$0xff]
      %v1058 = vld [vmem:[%s960 + $0x308] sm:$0xff]
      %v1059 = vld [vmem:[%s960 + $0x310] sm:$0xff]
      %v1060 = vld [vmem:[%s960 + $0x318] sm:$0xff]
      %v1061 = vld [vmem:[%s960 + $0x320] sm:$0xff]
      %v1062 = vld [vmem:[%s960 + $0x328] sm:$0xff]
      %v1063 = vld [vmem:[%s960 + $0x330] sm:$0xff]
      %v1064 = vld [vmem:[%s960 + $0x338] sm:$0xff]
      %v1065 = vld [vmem:[%s960 + $0x340] sm:$0xff]
      %v1066 = vld [vmem:[%s960 + $0x348] sm:$0xff]
      %v1067 = vld [vmem:[%s960 + $0x350] sm:$0xff]
      %v1068 = vld [vmem:[%s960 + $0x358] sm:$0xff]
      %v1069 = vld [vmem:[%s960 + $0x360] sm:$0xff]
      %v1070 = vld [vmem:[%s960 + $0x368] sm:$0xff]
      %v1071 = vld [vmem:[%s960 + $0x370] sm:$0xff]
      %v1072 = vld [vmem:[%s960 + $0x378] sm:$0xff]
      %v1073 = vld [vmem:[%s960 + $0x380] sm:$0xff]
      %v1074 = vld [vmem:[%s960 + $0x388] sm:$0xff]
      %v1075 = vld [vmem:[%s960 + $0x390] sm:$0xff]
      %v1076 = vld [vmem:[%s960 + $0x398] sm:$0xff]
      %v1077 = vld [vmem:[%s960 + $0x3a0] sm:$0xff]
      %v1078 = vld [vmem:[%s960 + $0x3a8] sm:$0xff]
      %v1079 = vld [vmem:[%s960 + $0x3b0] sm:$0xff]
      %v1080 = vld [vmem:[%s960 + $0x3b8] sm:$0xff]
      %v1081 = vld [vmem:[%s960 + $0x3c0] sm:$0xff]
      %v1082 = vld [vmem:[%s960 + $0x3c8] sm:$0xff]
      %v1083 = vld [vmem:[%s960 + $0x3d0] sm:$0xff]
      %v1084 = vld [vmem:[%s960 + $0x3d8] sm:$0xff]
      %v1085 = vld [vmem:[%s960 + $0x3e0] sm:$0xff]
      %v1086 = vld [vmem:[%s960 + $0x3e8] sm:$0xff]
      %v1087 = vld [vmem:[%s960 + $0x3f0] sm:$0xff]
      %v1088 = vld [vmem:[%s960 + $0x3f8] sm:$0xff]
      %v1089 = vld [vmem:[%s960 + $0x400] sm:$0xff]
      %v1090 = vld [vmem:[%s960 + $0x408] sm:$0xff]
      %v1091 = vld [vmem:[%s960 + $0x410] sm:$0xff]
      %v1092 = vld [vmem:[%s960 + $0x418] sm:$0xff]
      %v1093 = vld [vmem:[%s960 + $0x420] sm:$0xff]
      %v1094 = vld [vmem:[%s960 + $0x428] sm:$0xff]
      %v1095 = vld [vmem:[%s960 + $0x430] sm:$0xff]
      %v1096 = vld [vmem:[%s960 + $0x438] sm:$0xff]
      %v1097 = vld [vmem:[%s960 + $0x440] sm:$0xff]
      %v1098 = vld [vmem:[%s960 + $0x448] sm:$0xff]
      %v1099 = vld [vmem:[%s960 + $0x450] sm:$0xff]
      %v1100 = vld [vmem:[%s960 + $0x458] sm:$0xff]
      %v1101 = vld [vmem:[%s960 + $0x460] sm:$0xff]
      %v1102 = vld [vmem:[%s960 + $0x468] sm:$0xff]
      %v1103 = vld [vmem:[%s960 + $0x470] sm:$0xff]
      %v1104 = vld [vmem:[%s960 + $0x478] sm:$0xff]
      %vm1115 = vcmask 1045504
      %v1116 = vrot.slane %v950, 2
      %v1117 = vrot.slane %v955, 2
      %v1118 = vsel %vm1115, %v1116, %v1117
      %v1119 = vrot.slane %v951, 2
      %v1120 = vrot.slane %v956, 2
      %v1121 = vsel %vm1115, %v1119, %v1120
      %v1122 = vrot.slane %v952, 2
      %v1123 = vrot.slane %v957, 2
      %v1124 = vsel %vm1115, %v1122, %v1123
      %v1125 = vrot.slane %v953, 2
      %v1126 = vrot.slane %v958, 2
      %v1127 = vsel %vm1115, %v1125, %v1126
      %v1128 = vrot.slane %v954, 2
      %v1129 = vrot.slane %v959, 2
      %v1130 = vsel %vm1115, %v1128, %v1129
      %v1135 = vsel %vm518, %v1130, 0
      %1137 = vmatprep.subr.mxu0 %v962
      %1138 = vmatpush1.msra.mxu0 %v961
      %1139 = vmatprep.subr.mxu0 %v964
      %1140 = vmatpush1.msra.mxu0 %v963
      %1141 = vmatprep.subr.mxu0 %v966
      %1142 = vmatpush1.msra.mxu0 %v965
      %1143 = vmatprep.subr.mxu0 %v968
      %1144 = vmatpush1.msra.mxu0 %v967
      %1145 = vmatprep.subr.mxu0 %v970
      %1146 = vmatpush1.msra.mxu0 %v969
      %1147 = vmatprep.subr.mxu0 %v972
      %1148 = vmatpush1.msra.mxu0 %v971
      %1149 = vmatprep.subr.mxu0 %v974
      %1150 = vmatpush1.msra.mxu0 %v973
      %1151 = vmatprep.subr.mxu0 %v976
      %1152 = vmatpush1.msra.mxu0 %v975
      %1153 = vmatprep.subr.mxu0 %v978
      %1154 = vmatpush1.msra.mxu0 %v977
      %1155 = vmatprep.subr.mxu0 %v980
      %1156 = vmatpush1.msra.mxu0 %v979
      %1157 = vmatprep.subr.mxu0 %v982
      %1158 = vmatpush1.msra.mxu0 %v981
      %1159 = vmatprep.subr.mxu0 %v984
      %1160 = vmatpush1.msra.mxu0 %v983
      %1161 = vmatprep.subr.mxu0 %v986
      %1162 = vmatpush1.msra.mxu0 %v985
      %1163 = vmatprep.subr.mxu0 %v988
      %1164 = vmatpush1.msra.mxu0 %v987
      %1165 = vmatprep.subr.mxu0 %v990
      %1166 = vmatpush1.msra.mxu0 %v989
      %1167 = vmatprep.subr.mxu0 %v992
      %1168 = vmatpush1.msra.mxu0 %v991
      %1169 = vmatprep.subr.mxu0 %v994
      %1170 = vmatpush1.msra.mxu0 %v993
      %1171 = vmatprep.subr.mxu0 %v996
      %1172 = vmatpush1.msra.mxu0 %v995
      %1173 = vmatprep.subr.mxu0 %v998
      %1174 = vmatpush1.msra.mxu0 %v997
      %1175 = vmatprep.subr.mxu0 %v1000
      %1176 = vmatpush1.msra.mxu0 %v999
      %1177 = vmatprep.subr.mxu0 %v1002
      %1178 = vmatpush1.msra.mxu0 %v1001
      %1179 = vmatprep.subr.mxu0 %v1004
      %1180 = vmatpush1.msra.mxu0 %v1003
      %1181 = vmatprep.subr.mxu0 %v1006
      %1182 = vmatpush1.msra.mxu0 %v1005
      %1183 = vmatprep.subr.mxu0 %v1008
      %1184 = vmatpush1.msra.mxu0 %v1007
      %1185 = vmatprep.subr.mxu0 %v1010
      %1186 = vmatpush1.msra.mxu0 %v1009
      %1187 = vmatprep.subr.mxu0 %v1012
      %1188 = vmatpush1.msra.mxu0 %v1011
      %1189 = vmatprep.subr.mxu0 %v1014
      %1190 = vmatpush1.msra.mxu0 %v1013
      %1191 = vmatprep.subr.mxu0 %v1016
      %1192 = vmatpush1.msra.mxu0 %v1015
      %1193 = vmatprep.subr.mxu0 %v1018
      %1194 = vmatpush1.msra.mxu0 %v1017
      %1195 = vmatprep.subr.mxu0 %v1020
      %1196 = vmatpush1.msra.mxu0 %v1019
      %1197 = vmatprep.subr.mxu0 %v1022
      %1198 = vmatpush1.msra.mxu0 %v1021
      %1199 = vmatprep.subr.mxu0 %v1024
      %1200 = vmatpush1.msra.mxu0 %v1023
      %1201 = vmatprep.mubr.f32.mxu0 %v1121
      %1202 = vmatmul.mubr.f32.gmra.mrb[0].mxu0 %v1118
      %v1203 = vpop.f32.mrb[0].mxu0
      %v1204 = vadd.f32 0.0, %v1203
      %v1205 = vpop.f32.mrb[0].mxu0
      %v1206 = vadd.f32 0.0, %v1205
      %1207 = vdwg.mxu0
      %1208 = vmatprep.subr.mxu0 %v1026
      %1209 = vmatpush1.msra.mxu0 %v1025
      %1210 = vmatprep.subr.mxu0 %v1028
      %1211 = vmatpush1.msra.mxu0 %v1027
      %1212 = vmatprep.subr.mxu0 %v1030
      %1213 = vmatpush1.msra.mxu0 %v1029
      %1214 = vmatprep.subr.mxu0 %v1032
      %1215 = vmatpush1.msra.mxu0 %v1031
      %1216 = vmatprep.subr.mxu0 %v1034
      %1217 = vmatpush1.msra.mxu0 %v1033
      %1218 = vmatprep.subr.mxu0 %v1036
      %1219 = vmatpush1.msra.mxu0 %v1035
      %1220 = vmatprep.subr.mxu0 %v1038
      %1221 = vmatpush1.msra.mxu0 %v1037
      %1222 = vmatprep.subr.mxu0 %v1040
      %1223 = vmatpush1.msra.mxu0 %v1039
      %1224 = vmatprep.subr.mxu0 %v1042
      %1225 = vmatpush1.msra.mxu0 %v1041
      %1226 = vmatprep.subr.mxu0 %v1044
      %1227 = vmatpush1.msra.mxu0 %v1043
      %1228 = vmatprep.subr.mxu0 %v1046
      %1229 = vmatpush1.msra.mxu0 %v1045
      %1230 = vmatprep.subr.mxu0 %v1048
      %1231 = vmatpush1.msra.mxu0 %v1047
      %1232 = vmatprep.subr.mxu0 %v1050
      %1233 = vmatpush1.msra.mxu0 %v1049
      %1234 = vmatprep.subr.mxu0 %v1052
      %1235 = vmatpush1.msra.mxu0 %v1051
      %1236 = vmatprep.subr.mxu0 %v1054
      %1237 = vmatpush1.msra.mxu0 %v1053
      %1238 = vmatprep.subr.mxu0 %v1056
      %1239 = vmatpush1.msra.mxu0 %v1055
      %1240 = vmatprep.subr.mxu0 %v1058
      %1241 = vmatpush1.msra.mxu0 %v1057
      %1242 = vmatprep.subr.mxu0 %v1060
      %1243 = vmatpush1.msra.mxu0 %v1059
      %1244 = vmatprep.subr.mxu0 %v1062
      %1245 = vmatpush1.msra.mxu0 %v1061
      %1246 = vmatprep.subr.mxu0 %v1064
      %1247 = vmatpush1.msra.mxu0 %v1063
      %1248 = vmatprep.subr.mxu0 %v1066
      %1249 = vmatpush1.msra.mxu0 %v1065
      %1250 = vmatprep.subr.mxu0 %v1068
      %1251 = vmatpush1.msra.mxu0 %v1067
      %1252 = vmatprep.subr.mxu0 %v1070
      %1253 = vmatpush1.msra.mxu0 %v1069
      %1254 = vmatprep.subr.mxu0 %v1072
      %1255 = vmatpush1.msra.mxu0 %v1071
      %1256 = vmatprep.subr.mxu0 %v1074
      %1257 = vmatpush1.msra.mxu0 %v1073
      %1258 = vmatprep.subr.mxu0 %v1076
      %1259 = vmatpush1.msra.mxu0 %v1075
      %1260 = vmatprep.subr.mxu0 %v1078
      %1261 = vmatpush1.msra.mxu0 %v1077
      %1262 = vmatprep.subr.mxu0 %v1080
      %1263 = vmatpush1.msra.mxu0 %v1079
      %1264 = vmatprep.subr.mxu0 %v1082
      %1265 = vmatpush1.msra.mxu0 %v1081
      %1266 = vmatprep.subr.mxu0 %v1084
      %1267 = vmatpush1.msra.mxu0 %v1083
      %1268 = vmatprep.subr.mxu0 %v1086
      %1269 = vmatpush1.msra.mxu0 %v1085
      %1270 = vmatprep.subr.mxu0 %v1088
      %1271 = vmatpush1.msra.mxu0 %v1087
      %1272 = vmatprep.mubr.f32.mxu0 %v1127
      %1273 = vmatmul.mubr.f32.gmra.mrb[0].mxu0 %v1124
      %v1274 = vpop.f32.mrb[0].mxu0
      %v1275 = vadd.f32 %v1204, %v1274
      %v1276 = vpop.f32.mrb[0].mxu0
      %v1277 = vadd.f32 %v1206, %v1276
      %1278 = vdwg.mxu0
      %1279 = vmatprep.subr.mxu0 %v1090
      %1280 = vmatpush1.msra.mxu0 %v1089
      %1281 = vmatprep.subr.mxu0 %v1092
      %1282 = vmatpush1.msra.mxu0 %v1091
      %1283 = vmatprep.subr.mxu0 %v1094
      %1284 = vmatpush1.msra.mxu0 %v1093
      %1285 = vmatprep.subr.mxu0 %v1096
      %1286 = vmatpush1.msra.mxu0 %v1095
      %1287 = vmatprep.subr.mxu0 %v1098
      %1288 = vmatpush1.msra.mxu0 %v1097
      %1289 = vmatprep.subr.mxu0 %v1100
      %1290 = vmatpush1.msra.mxu0 %v1099
      %1291 = vmatprep.subr.mxu0 %v1102
      %1292 = vmatpush1.msra.mxu0 %v1101
      %1293 = vmatprep.subr.mxu0 %v1104
      %1294 = vmatpush1.msra.mxu0 %v1103
      %1295 = vmatprep.subr.mxu0 0.0
      %1296 = vmatpush1.msra.mxu0 0.0
      %1297 = vmatprep.subr.mxu0 0.0
      %1298 = vmatpush1.msra.mxu0 0.0
      %1299 = vmatprep.subr.mxu0 0.0
      %1300 = vmatpush1.msra.mxu0 0.0
      %1301 = vmatprep.subr.mxu0 0.0
      %1302 = vmatpush1.msra.mxu0 0.0
      %1303 = vmatprep.subr.mxu0 0.0
      %1304 = vmatpush1.msra.mxu0 0.0
      %1305 = vmatprep.subr.mxu0 0.0
      %1306 = vmatpush1.msra.mxu0 0.0
      %1307 = vmatprep.subr.mxu0 0.0
      %1308 = vmatpush1.msra.mxu0 0.0
      %1309 = vmatprep.subr.mxu0 0.0
      %1310 = vmatpush1.msra.mxu0 0.0
      %1311 = vmatprep.subr.mxu0 0.0
      %1312 = vmatpush1.msra.mxu0 0.0
      %1313 = vmatprep.subr.mxu0 0.0
      %1314 = vmatpush1.msra.mxu0 0.0
      %1315 = vmatprep.subr.mxu0 0.0
      %1316 = vmatpush1.msra.mxu0 0.0
      %1317 = vmatprep.subr.mxu0 0.0
      %1318 = vmatpush1.msra.mxu0 0.0
      %1319 = vmatprep.subr.mxu0 0.0
      %1320 = vmatpush1.msra.mxu0 0.0
      %1321 = vmatprep.subr.mxu0 0.0
      %1322 = vmatpush1.msra.mxu0 0.0
      %1323 = vmatprep.subr.mxu0 0.0
      %1324 = vmatpush1.msra.mxu0 0.0
      %1325 = vmatprep.subr.mxu0 0.0
      %1326 = vmatpush1.msra.mxu0 0.0
      %1327 = vmatprep.subr.mxu0 0.0
      %1328 = vmatpush1.msra.mxu0 0.0
      %1329 = vmatprep.subr.mxu0 0.0
      %1330 = vmatpush1.msra.mxu0 0.0
      %1331 = vmatprep.subr.mxu0 0.0
      %1332 = vmatpush1.msra.mxu0 0.0
      %1333 = vmatprep.subr.mxu0 0.0
      %1334 = vmatpush1.msra.mxu0 0.0
      %1335 = vmatprep.subr.mxu0 0.0
      %1336 = vmatpush1.msra.mxu0 0.0
      %1337 = vmatprep.subr.mxu0 0.0
      %1338 = vmatpush1.msra.mxu0 0.0
      %1339 = vmatprep.subr.mxu0 0.0
      %1340 = vmatpush1.msra.mxu0 0.0
      %1341 = vmatprep.subr.mxu0 0.0
      %1342 = vmatpush1.msra.mxu0 0.0
      %1343 = vmatprep.mubr.f32.mxu0 0.0
      %1344 = vmatmul.mubr.f32.gmra.mrb[0].mxu0 %v1135
      %v1345 = vpop.f32.mrb[0].mxu0
      %v1346 = vadd.f32 %v1275, %v1345
      %v1347 = vpop.f32.mrb[0].mxu0
      %v1348 = vadd.f32 %v1277, %v1347
      %1349 = vdwg.mxu0
      %v1350 = vadd.f32 %v946, %v1346
      %v1351 = vadd.f32 %v948, %v1348
      %v1352 = vld [vmem:[%s173] sm:$0xf8]
      %v1353 = vld [vmem:[%s173 + $0x8] sm:$0xf8]
      %v1354 = vld [vmem:[%s173 + $0x10] sm:$0xf8]
      %v1355 = vld [vmem:[%s173 + $0x18] sm:$0xf8]
      %v1356 = vld [vmem:[%s173 + $0x20] sm:$0xf8]
      %v1357 = vld [vmem:[%s173 + $0x28] sm:$0x7]
      %v1358 = vld [vmem:[%s173 + $0x30] sm:$0x7]
      %v1359 = vld [vmem:[%s173 + $0x38] sm:$0x7]
      %v1360 = vld [vmem:[%s173 + $0x40] sm:$0x7]
      %v1361 = vld [vmem:[%s173 + $0x48] sm:$0x7]
      %s1362 = scalar_lea.vmem %s1, 3456
      %v1363 = vld [vmem:[%s1362] sm:$0xff]
      %v1364 = vld [vmem:[%s1362 + $0x8] sm:$0xff]
      %v1365 = vld [vmem:[%s1362 + $0x10] sm:$0xff]
      %v1366 = vld [vmem:[%s1362 + $0x18] sm:$0xff]
      %v1367 = vld [vmem:[%s1362 + $0x20] sm:$0xff]
      %v1368 = vld [vmem:[%s1362 + $0x28] sm:$0xff]
      %v1369 = vld [vmem:[%s1362 + $0x30] sm:$0xff]
      %v1370 = vld [vmem:[%s1362 + $0x38] sm:$0xff]
      %v1371 = vld [vmem:[%s1362 + $0x40] sm:$0xff]
      %v1372 = vld [vmem:[%s1362 + $0x48] sm:$0xff]
      %v1373 = vld [vmem:[%s1362 + $0x50] sm:$0xff]
      %v1374 = vld [vmem:[%s1362 + $0x58] sm:$0xff]
      %v1375 = vld [vmem:[%s1362 + $0x60] sm:$0xff]
      %v1376 = vld [vmem:[%s1362 + $0x68] sm:$0xff]
      %v1377 = vld [vmem:[%s1362 + $0x70] sm:$0xff]
      %v1378 = vld [vmem:[%s1362 + $0x78] sm:$0xff]
      %v1379 = vld [vmem:[%s1362 + $0x80] sm:$0xff]
      %v1380 = vld [vmem:[%s1362 + $0x88] sm:$0xff]
      %v1381 = vld [vmem:[%s1362 + $0x90] sm:$0xff]
      %v1382 = vld [vmem:[%s1362 + $0x98] sm:$0xff]
      %v1383 = vld [vmem:[%s1362 + $0xa0] sm:$0xff]
      %v1384 = vld [vmem:[%s1362 + $0xa8] sm:$0xff]
      %v1385 = vld [vmem:[%s1362 + $0xb0] sm:$0xff]
      %v1386 = vld [vmem:[%s1362 + $0xb8] sm:$0xff]
      %v1387 = vld [vmem:[%s1362 + $0xc0] sm:$0xff]
      %v1388 = vld [vmem:[%s1362 + $0xc8] sm:$0xff]
      %v1389 = vld [vmem:[%s1362 + $0xd0] sm:$0xff]
      %v1390 = vld [vmem:[%s1362 + $0xd8] sm:$0xff]
      %v1391 = vld [vmem:[%s1362 + $0xe0] sm:$0xff]
      %v1392 = vld [vmem:[%s1362 + $0xe8] sm:$0xff]
      %v1393 = vld [vmem:[%s1362 + $0xf0] sm:$0xff]
      %v1394 = vld [vmem:[%s1362 + $0xf8] sm:$0xff]
      %v1395 = vld [vmem:[%s1362 + $0x100] sm:$0xff]
      %v1396 = vld [vmem:[%s1362 + $0x108] sm:$0xff]
      %v1397 = vld [vmem:[%s1362 + $0x110] sm:$0xff]
      %v1398 = vld [vmem:[%s1362 + $0x118] sm:$0xff]
      %v1399 = vld [vmem:[%s1362 + $0x120] sm:$0xff]
      %v1400 = vld [vmem:[%s1362 + $0x128] sm:$0xff]
      %v1401 = vld [vmem:[%s1362 + $0x130] sm:$0xff]
      %v1402 = vld [vmem:[%s1362 + $0x138] sm:$0xff]
      %v1403 = vld [vmem:[%s1362 + $0x140] sm:$0xff]
      %v1404 = vld [vmem:[%s1362 + $0x148] sm:$0xff]
      %v1405 = vld [vmem:[%s1362 + $0x150] sm:$0xff]
      %v1406 = vld [vmem:[%s1362 + $0x158] sm:$0xff]
      %v1407 = vld [vmem:[%s1362 + $0x160] sm:$0xff]
      %v1408 = vld [vmem:[%s1362 + $0x168] sm:$0xff]
      %v1409 = vld [vmem:[%s1362 + $0x170] sm:$0xff]
      %v1410 = vld [vmem:[%s1362 + $0x178] sm:$0xff]
      %v1411 = vld [vmem:[%s1362 + $0x180] sm:$0xff]
      %v1412 = vld [vmem:[%s1362 + $0x188] sm:$0xff]
      %v1413 = vld [vmem:[%s1362 + $0x190] sm:$0xff]
      %v1414 = vld [vmem:[%s1362 + $0x198] sm:$0xff]
      %v1415 = vld [vmem:[%s1362 + $0x1a0] sm:$0xff]
      %v1416 = vld [vmem:[%s1362 + $0x1a8] sm:$0xff]
      %v1417 = vld [vmem:[%s1362 + $0x1b0] sm:$0xff]
      %v1418 = vld [vmem:[%s1362 + $0x1b8] sm:$0xff]
      %v1419 = vld [vmem:[%s1362 + $0x1c0] sm:$0xff]
      %v1420 = vld [vmem:[%s1362 + $0x1c8] sm:$0xff]
      %v1421 = vld [vmem:[%s1362 + $0x1d0] sm:$0xff]
      %v1422 = vld [vmem:[%s1362 + $0x1d8] sm:$0xff]
      %v1423 = vld [vmem:[%s1362 + $0x1e0] sm:$0xff]
      %v1424 = vld [vmem:[%s1362 + $0x1e8] sm:$0xff]
      %v1425 = vld [vmem:[%s1362 + $0x1f0] sm:$0xff]
      %v1426 = vld [vmem:[%s1362 + $0x1f8] sm:$0xff]
      %v1427 = vld [vmem:[%s1362 + $0x200] sm:$0xff]
      %v1428 = vld [vmem:[%s1362 + $0x208] sm:$0xff]
      %v1429 = vld [vmem:[%s1362 + $0x210] sm:$0xff]
      %v1430 = vld [vmem:[%s1362 + $0x218] sm:$0xff]
      %v1431 = vld [vmem:[%s1362 + $0x220] sm:$0xff]
      %v1432 = vld [vmem:[%s1362 + $0x228] sm:$0xff]
      %v1433 = vld [vmem:[%s1362 + $0x230] sm:$0xff]
      %v1434 = vld [vmem:[%s1362 + $0x238] sm:$0xff]
      %v1435 = vld [vmem:[%s1362 + $0x240] sm:$0xff]
      %v1436 = vld [vmem:[%s1362 + $0x248] sm:$0xff]
      %v1437 = vld [vmem:[%s1362 + $0x250] sm:$0xff]
      %v1438 = vld [vmem:[%s1362 + $0x258] sm:$0xff]
      %v1439 = vld [vmem:[%s1362 + $0x260] sm:$0xff]
      %v1440 = vld [vmem:[%s1362 + $0x268] sm:$0xff]
      %v1441 = vld [vmem:[%s1362 + $0x270] sm:$0xff]
      %v1442 = vld [vmem:[%s1362 + $0x278] sm:$0xff]
      %v1443 = vld [vmem:[%s1362 + $0x280] sm:$0xff]
      %v1444 = vld [vmem:[%s1362 + $0x288] sm:$0xff]
      %v1445 = vld [vmem:[%s1362 + $0x290] sm:$0xff]
      %v1446 = vld [vmem:[%s1362 + $0x298] sm:$0xff]
      %v1447 = vld [vmem:[%s1362 + $0x2a0] sm:$0xff]
      %v1448 = vld [vmem:[%s1362 + $0x2a8] sm:$0xff]
      %v1449 = vld [vmem:[%s1362 + $0x2b0] sm:$0xff]
      %v1450 = vld [vmem:[%s1362 + $0x2b8] sm:$0xff]
      %v1451 = vld [vmem:[%s1362 + $0x2c0] sm:$0xff]
      %v1452 = vld [vmem:[%s1362 + $0x2c8] sm:$0xff]
      %v1453 = vld [vmem:[%s1362 + $0x2d0] sm:$0xff]
      %v1454 = vld [vmem:[%s1362 + $0x2d8] sm:$0xff]
      %v1455 = vld [vmem:[%s1362 + $0x2e0] sm:$0xff]
      %v1456 = vld [vmem:[%s1362 + $0x2e8] sm:$0xff]
      %v1457 = vld [vmem:[%s1362 + $0x2f0] sm:$0xff]
      %v1458 = vld [vmem:[%s1362 + $0x2f8] sm:$0xff]
      %v1459 = vld [vmem:[%s1362 + $0x300] sm:$0xff]
      %v1460 = vld [vmem:[%s1362 + $0x308] sm:$0xff]
      %v1461 = vld [vmem:[%s1362 + $0x310] sm:$0xff]
      %v1462 = vld [vmem:[%s1362 + $0x318] sm:$0xff]
      %v1463 = vld [vmem:[%s1362 + $0x320] sm:$0xff]
      %v1464 = vld [vmem:[%s1362 + $0x328] sm:$0xff]
      %v1465 = vld [vmem:[%s1362 + $0x330] sm:$0xff]
      %v1466 = vld [vmem:[%s1362 + $0x338] sm:$0xff]
      %v1467 = vld [vmem:[%s1362 + $0x340] sm:$0xff]
      %v1468 = vld [vmem:[%s1362 + $0x348] sm:$0xff]
      %v1469 = vld [vmem:[%s1362 + $0x350] sm:$0xff]
      %v1470 = vld [vmem:[%s1362 + $0x358] sm:$0xff]
      %v1471 = vld [vmem:[%s1362 + $0x360] sm:$0xff]
      %v1472 = vld [vmem:[%s1362 + $0x368] sm:$0xff]
      %v1473 = vld [vmem:[%s1362 + $0x370] sm:$0xff]
      %v1474 = vld [vmem:[%s1362 + $0x378] sm:$0xff]
      %v1475 = vld [vmem:[%s1362 + $0x380] sm:$0xff]
      %v1476 = vld [vmem:[%s1362 + $0x388] sm:$0xff]
      %v1477 = vld [vmem:[%s1362 + $0x390] sm:$0xff]
      %v1478 = vld [vmem:[%s1362 + $0x398] sm:$0xff]
      %v1479 = vld [vmem:[%s1362 + $0x3a0] sm:$0xff]
      %v1480 = vld [vmem:[%s1362 + $0x3a8] sm:$0xff]
      %v1481 = vld [vmem:[%s1362 + $0x3b0] sm:$0xff]
      %v1482 = vld [vmem:[%s1362 + $0x3b8] sm:$0xff]
      %v1483 = vld [vmem:[%s1362 + $0x3c0] sm:$0xff]
      %v1484 = vld [vmem:[%s1362 + $0x3c8] sm:$0xff]
      %v1485 = vld [vmem:[%s1362 + $0x3d0] sm:$0xff]
      %v1486 = vld [vmem:[%s1362 + $0x3d8] sm:$0xff]
      %v1487 = vld [vmem:[%s1362 + $0x3e0] sm:$0xff]
      %v1488 = vld [vmem:[%s1362 + $0x3e8] sm:$0xff]
      %v1489 = vld [vmem:[%s1362 + $0x3f0] sm:$0xff]
      %v1490 = vld [vmem:[%s1362 + $0x3f8] sm:$0xff]
      %v1491 = vld [vmem:[%s1362 + $0x400] sm:$0xff]
      %v1492 = vld [vmem:[%s1362 + $0x408] sm:$0xff]
      %v1493 = vld [vmem:[%s1362 + $0x410] sm:$0xff]
      %v1494 = vld [vmem:[%s1362 + $0x418] sm:$0xff]
      %v1495 = vld [vmem:[%s1362 + $0x420] sm:$0xff]
      %v1496 = vld [vmem:[%s1362 + $0x428] sm:$0xff]
      %v1497 = vld [vmem:[%s1362 + $0x430] sm:$0xff]
      %v1498 = vld [vmem:[%s1362 + $0x438] sm:$0xff]
      %v1499 = vld [vmem:[%s1362 + $0x440] sm:$0xff]
      %v1500 = vld [vmem:[%s1362 + $0x448] sm:$0xff]
      %v1501 = vld [vmem:[%s1362 + $0x450] sm:$0xff]
      %v1502 = vld [vmem:[%s1362 + $0x458] sm:$0xff]
      %v1503 = vld [vmem:[%s1362 + $0x460] sm:$0xff]
      %v1504 = vld [vmem:[%s1362 + $0x468] sm:$0xff]
      %v1505 = vld [vmem:[%s1362 + $0x470] sm:$0xff]
      %v1506 = vld [vmem:[%s1362 + $0x478] sm:$0xff]
      %vm1517 = vcmask 1044480
      %v1518 = vrot.slane %v1352, 3
      %v1519 = vrot.slane %v1357, 3
      %v1520 = vsel %vm1517, %v1518, %v1519
      %v1521 = vrot.slane %v1353, 3
      %v1522 = vrot.slane %v1358, 3
      %v1523 = vsel %vm1517, %v1521, %v1522
      %v1524 = vrot.slane %v1354, 3
      %v1525 = vrot.slane %v1359, 3
      %v1526 = vsel %vm1517, %v1524, %v1525
      %v1527 = vrot.slane %v1355, 3
      %v1528 = vrot.slane %v1360, 3
      %v1529 = vsel %vm1517, %v1527, %v1528
      %v1530 = vrot.slane %v1356, 3
      %v1531 = vrot.slane %v1361, 3
      %v1532 = vsel %vm1517, %v1530, %v1531
      %v1537 = vsel %vm518, %v1532, 0
      %1539 = vmatprep.subr.mxu0 %v1364
      %1540 = vmatpush1.msra.mxu0 %v1363
      %1541 = vmatprep.subr.mxu0 %v1366
      %1542 = vmatpush1.msra.mxu0 %v1365
      %1543 = vmatprep.subr.mxu0 %v1368
      %1544 = vmatpush1.msra.mxu0 %v1367
      %1545 = vmatprep.subr.mxu0 %v1370
      %1546 = vmatpush1.msra.mxu0 %v1369
      %1547 = vmatprep.subr.mxu0 %v1372
      %1548 = vmatpush1.msra.mxu0 %v1371
      %1549 = vmatprep.subr.mxu0 %v1374
      %1550 = vmatpush1.msra.mxu0 %v1373
      %1551 = vmatprep.subr.mxu0 %v1376
      %1552 = vmatpush1.msra.mxu0 %v1375
      %1553 = vmatprep.subr.mxu0 %v1378
      %1554 = vmatpush1.msra.mxu0 %v1377
      %1555 = vmatprep.subr.mxu0 %v1380
      %1556 = vmatpush1.msra.mxu0 %v1379
      %1557 = vmatprep.subr.mxu0 %v1382
      %1558 = vmatpush1.msra.mxu0 %v1381
      %1559 = vmatprep.subr.mxu0 %v1384
      %1560 = vmatpush1.msra.mxu0 %v1383
      %1561 = vmatprep.subr.mxu0 %v1386
      %1562 = vmatpush1.msra.mxu0 %v1385
      %1563 = vmatprep.subr.mxu0 %v1388
      %1564 = vmatpush1.msra.mxu0 %v1387
      %1565 = vmatprep.subr.mxu0 %v1390
      %1566 = vmatpush1.msra.mxu0 %v1389
      %1567 = vmatprep.subr.mxu0 %v1392
      %1568 = vmatpush1.msra.mxu0 %v1391
      %1569 = vmatprep.subr.mxu0 %v1394
      %1570 = vmatpush1.msra.mxu0 %v1393
      %1571 = vmatprep.subr.mxu0 %v1396
      %1572 = vmatpush1.msra.mxu0 %v1395
      %1573 = vmatprep.subr.mxu0 %v1398
      %1574 = vmatpush1.msra.mxu0 %v1397
      %1575 = vmatprep.subr.mxu0 %v1400
      %1576 = vmatpush1.msra.mxu0 %v1399
      %1577 = vmatprep.subr.mxu0 %v1402
      %1578 = vmatpush1.msra.mxu0 %v1401
      %1579 = vmatprep.subr.mxu0 %v1404
      %1580 = vmatpush1.msra.mxu0 %v1403
      %1581 = vmatprep.subr.mxu0 %v1406
      %1582 = vmatpush1.msra.mxu0 %v1405
      %1583 = vmatprep.subr.mxu0 %v1408
      %1584 = vmatpush1.msra.mxu0 %v1407
      %1585 = vmatprep.subr.mxu0 %v1410
      %1586 = vmatpush1.msra.mxu0 %v1409
      %1587 = vmatprep.subr.mxu0 %v1412
      %1588 = vmatpush1.msra.mxu0 %v1411
      %1589 = vmatprep.subr.mxu0 %v1414
      %1590 = vmatpush1.msra.mxu0 %v1413
      %1591 = vmatprep.subr.mxu0 %v1416
      %1592 = vmatpush1.msra.mxu0 %v1415
      %1593 = vmatprep.subr.mxu0 %v1418
      %1594 = vmatpush1.msra.mxu0 %v1417
      %1595 = vmatprep.subr.mxu0 %v1420
      %1596 = vmatpush1.msra.mxu0 %v1419
      %1597 = vmatprep.subr.mxu0 %v1422
      %1598 = vmatpush1.msra.mxu0 %v1421
      %1599 = vmatprep.subr.mxu0 %v1424
      %1600 = vmatpush1.msra.mxu0 %v1423
      %1601 = vmatprep.subr.mxu0 %v1426
      %1602 = vmatpush1.msra.mxu0 %v1425
      %1603 = vmatprep.mubr.f32.mxu0 %v1523
      %1604 = vmatmul.mubr.f32.gmra.mrb[0].mxu0 %v1520
      %v1605 = vpop.f32.mrb[0].mxu0
      %v1606 = vadd.f32 0.0, %v1605
      %v1607 = vpop.f32.mrb[0].mxu0
      %v1608 = vadd.f32 0.0, %v1607
      %1609 = vdwg.mxu0
      %1610 = vmatprep.subr.mxu0 %v1428
      %1611 = vmatpush1.msra.mxu0 %v1427
      %1612 = vmatprep.subr.mxu0 %v1430
      %1613 = vmatpush1.msra.mxu0 %v1429
      %1614 = vmatprep.subr.mxu0 %v1432
      %1615 = vmatpush1.msra.mxu0 %v1431
      %1616 = vmatprep.subr.mxu0 %v1434
      %1617 = vmatpush1.msra.mxu0 %v1433
      %1618 = vmatprep.subr.mxu0 %v1436
      %1619 = vmatpush1.msra.mxu0 %v1435
      %1620 = vmatprep.subr.mxu0 %v1438
      %1621 = vmatpush1.msra.mxu0 %v1437
      %1622 = vmatprep.subr.mxu0 %v1440
      %1623 = vmatpush1.msra.mxu0 %v1439
      %1624 = vmatprep.subr.mxu0 %v1442
      %1625 = vmatpush1.msra.mxu0 %v1441
      %1626 = vmatprep.subr.mxu0 %v1444
      %1627 = vmatpush1.msra.mxu0 %v1443
      %1628 = vmatprep.subr.mxu0 %v1446
      %1629 = vmatpush1.msra.mxu0 %v1445
      %1630 = vmatprep.subr.mxu0 %v1448
      %1631 = vmatpush1.msra.mxu0 %v1447
      %1632 = vmatprep.subr.mxu0 %v1450
      %1633 = vmatpush1.msra.mxu0 %v1449
      %1634 = vmatprep.subr.mxu0 %v1452
      %1635 = vmatpush1.msra.mxu0 %v1451
      %1636 = vmatprep.subr.mxu0 %v1454
      %1637 = vmatpush1.msra.mxu0 %v1453
      %1638 = vmatprep.subr.mxu0 %v1456
      %1639 = vmatpush1.msra.mxu0 %v1455
      %1640 = vmatprep.subr.mxu0 %v1458
      %1641 = vmatpush1.msra.mxu0 %v1457
      %1642 = vmatprep.subr.mxu0 %v1460
      %1643 = vmatpush1.msra.mxu0 %v1459
      %1644 = vmatprep.subr.mxu0 %v1462
      %1645 = vmatpush1.msra.mxu0 %v1461
      %1646 = vmatprep.subr.mxu0 %v1464
      %1647 = vmatpush1.msra.mxu0 %v1463
      %1648 = vmatprep.subr.mxu0 %v1466
      %1649 = vmatpush1.msra.mxu0 %v1465
      %1650 = vmatprep.subr.mxu0 %v1468
      %1651 = vmatpush1.msra.mxu0 %v1467
      %1652 = vmatprep.subr.mxu0 %v1470
      %1653 = vmatpush1.msra.mxu0 %v1469
      %1654 = vmatprep.subr.mxu0 %v1472
      %1655 = vmatpush1.msra.mxu0 %v1471
      %1656 = vmatprep.subr.mxu0 %v1474
      %1657 = vmatpush1.msra.mxu0 %v1473
      %1658 = vmatprep.subr.mxu0 %v1476
      %1659 = vmatpush1.msra.mxu0 %v1475
      %1660 = vmatprep.subr.mxu0 %v1478
      %1661 = vmatpush1.msra.mxu0 %v1477
      %1662 = vmatprep.subr.mxu0 %v1480
      %1663 = vmatpush1.msra.mxu0 %v1479
      %1664 = vmatprep.subr.mxu0 %v1482
      %1665 = vmatpush1.msra.mxu0 %v1481
      %1666 = vmatprep.subr.mxu0 %v1484
      %1667 = vmatpush1.msra.mxu0 %v1483
      %1668 = vmatprep.subr.mxu0 %v1486
      %1669 = vmatpush1.msra.mxu0 %v1485
      %1670 = vmatprep.subr.mxu0 %v1488
      %1671 = vmatpush1.msra.mxu0 %v1487
      %1672 = vmatprep.subr.mxu0 %v1490
      %1673 = vmatpush1.msra.mxu0 %v1489
      %1674 = vmatprep.mubr.f32.mxu0 %v1529
      %1675 = vmatmul.mubr.f32.gmra.mrb[0].mxu0 %v1526
      %v1676 = vpop.f32.mrb[0].mxu0
      %v1677 = vadd.f32 %v1606, %v1676
      %v1678 = vpop.f32.mrb[0].mxu0
      %v1679 = vadd.f32 %v1608, %v1678
      %1680 = vdwg.mxu0
      %1681 = vmatprep.subr.mxu0 %v1492
      %1682 = vmatpush1.msra.mxu0 %v1491
      %1683 = vmatprep.subr.mxu0 %v1494
      %1684 = vmatpush1.msra.mxu0 %v1493
      %1685 = vmatprep.subr.mxu0 %v1496
      %1686 = vmatpush1.msra.mxu0 %v1495
      %1687 = vmatprep.subr.mxu0 %v1498
      %1688 = vmatpush1.msra.mxu0 %v1497
      %1689 = vmatprep.subr.mxu0 %v1500
      %1690 = vmatpush1.msra.mxu0 %v1499
      %1691 = vmatprep.subr.mxu0 %v1502
      %1692 = vmatpush1.msra.mxu0 %v1501
      %1693 = vmatprep.subr.mxu0 %v1504
      %1694 = vmatpush1.msra.mxu0 %v1503
      %1695 = vmatprep.subr.mxu0 %v1506
      %1696 = vmatpush1.msra.mxu0 %v1505
      %1697 = vmatprep.subr.mxu0 0.0
      %1698 = vmatpush1.msra.mxu0 0.0
      %1699 = vmatprep.subr.mxu0 0.0
      %1700 = vmatpush1.msra.mxu0 0.0
      %1701 = vmatprep.subr.mxu0 0.0
      %1702 = vmatpush1.msra.mxu0 0.0
      %1703 = vmatprep.subr.mxu0 0.0
      %1704 = vmatpush1.msra.mxu0 0.0
      %1705 = vmatprep.subr.mxu0 0.0
      %1706 = vmatpush1.msra.mxu0 0.0
      %1707 = vmatprep.subr.mxu0 0.0
      %1708 = vmatpush1.msra.mxu0 0.0
      %1709 = vmatprep.subr.mxu0 0.0
      %1710 = vmatpush1.msra.mxu0 0.0
      %1711 = vmatprep.subr.mxu0 0.0
      %1712 = vmatpush1.msra.mxu0 0.0
      %1713 = vmatprep.subr.mxu0 0.0
      %1714 = vmatpush1.msra.mxu0 0.0
      %1715 = vmatprep.subr.mxu0 0.0
      %1716 = vmatpush1.msra.mxu0 0.0
      %1717 = vmatprep.subr.mxu0 0.0
      %1718 = vmatpush1.msra.mxu0 0.0
      %1719 = vmatprep.subr.mxu0 0.0
      %1720 = vmatpush1.msra.mxu0 0.0
      %1721 = vmatprep.subr.mxu0 0.0
      %1722 = vmatpush1.msra.mxu0 0.0
      %1723 = vmatprep.subr.mxu0 0.0
      %1724 = vmatpush1.msra.mxu0 0.0
      %1725 = vmatprep.subr.mxu0 0.0
      %1726 = vmatpush1.msra.mxu0 0.0
      %1727 = vmatprep.subr.mxu0 0.0
      %1728 = vmatpush1.msra.mxu0 0.0
      %1729 = vmatprep.subr.mxu0 0.0
      %1730 = vmatpush1.msra.mxu0 0.0
      %1731 = vmatprep.subr.mxu0 0.0
      %1732 = vmatpush1.msra.mxu0 0.0
      %1733 = vmatprep.subr.mxu0 0.0
      %1734 = vmatpush1.msra.mxu0 0.0
      %1735 = vmatprep.subr.mxu0 0.0
      %1736 = vmatpush1.msra.mxu0 0.0
      %1737 = vmatprep.subr.mxu0 0.0
      %1738 = vmatpush1.msra.mxu0 0.0
      %1739 = vmatprep.subr.mxu0 0.0
      %1740 = vmatpush1.msra.mxu0 0.0
      %1741 = vmatprep.subr.mxu0 0.0
      %1742 = vmatpush1.msra.mxu0 0.0
      %1743 = vmatprep.subr.mxu0 0.0
      %1744 = vmatpush1.msra.mxu0 0.0
      %1745 = vmatprep.mubr.f32.mxu0 0.0
      %1746 = vmatmul.mubr.f32.gmra.mrb[0].mxu0 %v1537
      %v1747 = vpop.f32.mrb[0].mxu0
      %v1748 = vadd.f32 %v1677, %v1747
      %v1749 = vpop.f32.mrb[0].mxu0
      %v1750 = vadd.f32 %v1679, %v1749
      %1751 = vdwg.mxu0
      %v1752 = vadd.f32 %v1350, %v1748
      %v1753 = vadd.f32 %v1351, %v1750
      %v1754 = vld [vmem:[%s173] sm:$0xf0]
      %v1755 = vld [vmem:[%s173 + $0x8] sm:$0xf0]
      %v1756 = vld [vmem:[%s173 + $0x10] sm:$0xf0]
      %v1757 = vld [vmem:[%s173 + $0x18] sm:$0xf0]
      %v1758 = vld [vmem:[%s173 + $0x20] sm:$0xf0]
      %v1759 = vld [vmem:[%s173 + $0x28] sm:$0xf]
      %v1760 = vld [vmem:[%s173 + $0x30] sm:$0xf]
      %v1761 = vld [vmem:[%s173 + $0x38] sm:$0xf]
      %v1762 = vld [vmem:[%s173 + $0x40] sm:$0xf]
      %v1763 = vld [vmem:[%s173 + $0x48] sm:$0xf]
      %s1764 = scalar_lea.vmem %s1, 4608
      %v1765 = vld [vmem:[%s1764] sm:$0xff]
      %v1766 = vld [vmem:[%s1764 + $0x8] sm:$0xff]
      %v1767 = vld [vmem:[%s1764 + $0x10] sm:$0xff]
      %v1768 = vld [vmem:[%s1764 + $0x18] sm:$0xff]
      %v1769 = vld [vmem:[%s1764 + $0x20] sm:$0xff]
      %v1770 = vld [vmem:[%s1764 + $0x28] sm:$0xff]
      %v1771 = vld [vmem:[%s1764 + $0x30] sm:$0xff]
      %v1772 = vld [vmem:[%s1764 + $0x38] sm:$0xff]
      %v1773 = vld [vmem:[%s1764 + $0x40] sm:$0xff]
      %v1774 = vld [vmem:[%s1764 + $0x48] sm:$0xff]
      %v1775 = vld [vmem:[%s1764 + $0x50] sm:$0xff]
      %v1776 = vld [vmem:[%s1764 + $0x58] sm:$0xff]
      %v1777 = vld [vmem:[%s1764 + $0x60] sm:$0xff]
      %v1778 = vld [vmem:[%s1764 + $0x68] sm:$0xff]
      %v1779 = vld [vmem:[%s1764 + $0x70] sm:$0xff]
      %v1780 = vld [vmem:[%s1764 + $0x78] sm:$0xff]
      %v1781 = vld [vmem:[%s1764 + $0x80] sm:$0xff]
      %v1782 = vld [vmem:[%s1764 + $0x88] sm:$0xff]
      %v1783 = vld [vmem:[%s1764 + $0x90] sm:$0xff]
      %v1784 = vld [vmem:[%s1764 + $0x98] sm:$0xff]
      %v1785 = vld [vmem:[%s1764 + $0xa0] sm:$0xff]
      %v1786 = vld [vmem:[%s1764 + $0xa8] sm:$0xff]
      %v1787 = vld [vmem:[%s1764 + $0xb0] sm:$0xff]
      %v1788 = vld [vmem:[%s1764 + $0xb8] sm:$0xff]
      %v1789 = vld [vmem:[%s1764 + $0xc0] sm:$0xff]
      %v1790 = vld [vmem:[%s1764 + $0xc8] sm:$0xff]
      %v1791 = vld [vmem:[%s1764 + $0xd0] sm:$0xff]
      %v1792 = vld [vmem:[%s1764 + $0xd8] sm:$0xff]
      %v1793 = vld [vmem:[%s1764 + $0xe0] sm:$0xff]
      %v1794 = vld [vmem:[%s1764 + $0xe8] sm:$0xff]
      %v1795 = vld [vmem:[%s1764 + $0xf0] sm:$0xff]
      %v1796 = vld [vmem:[%s1764 + $0xf8] sm:$0xff]
      %v1797 = vld [vmem:[%s1764 + $0x100] sm:$0xff]
      %v1798 = vld [vmem:[%s1764 + $0x108] sm:$0xff]
      %v1799 = vld [vmem:[%s1764 + $0x110] sm:$0xff]
      %v1800 = vld [vmem:[%s1764 + $0x118] sm:$0xff]
      %v1801 = vld [vmem:[%s1764 + $0x120] sm:$0xff]
      %v1802 = vld [vmem:[%s1764 + $0x128] sm:$0xff]
      %v1803 = vld [vmem:[%s1764 + $0x130] sm:$0xff]
      %v1804 = vld [vmem:[%s1764 + $0x138] sm:$0xff]
      %v1805 = vld [vmem:[%s1764 + $0x140] sm:$0xff]
      %v1806 = vld [vmem:[%s1764 + $0x148] sm:$0xff]
      %v1807 = vld [vmem:[%s1764 + $0x150] sm:$0xff]
      %v1808 = vld [vmem:[%s1764 + $0x158] sm:$0xff]
      %v1809 = vld [vmem:[%s1764 + $0x160] sm:$0xff]
      %v1810 = vld [vmem:[%s1764 + $0x168] sm:$0xff]
      %v1811 = vld [vmem:[%s1764 + $0x170] sm:$0xff]
      %v1812 = vld [vmem:[%s1764 + $0x178] sm:$0xff]
      %v1813 = vld [vmem:[%s1764 + $0x180] sm:$0xff]
      %v1814 = vld [vmem:[%s1764 + $0x188] sm:$0xff]
      %v1815 = vld [vmem:[%s1764 + $0x190] sm:$0xff]
      %v1816 = vld [vmem:[%s1764 + $0x198] sm:$0xff]
      %v1817 = vld [vmem:[%s1764 + $0x1a0] sm:$0xff]
      %v1818 = vld [vmem:[%s1764 + $0x1a8] sm:$0xff]
      %v1819 = vld [vmem:[%s1764 + $0x1b0] sm:$0xff]
      %v1820 = vld [vmem:[%s1764 + $0x1b8] sm:$0xff]
      %v1821 = vld [vmem:[%s1764 + $0x1c0] sm:$0xff]
      %v1822 = vld [vmem:[%s1764 + $0x1c8] sm:$0xff]
      %v1823 = vld [vmem:[%s1764 + $0x1d0] sm:$0xff]
      %v1824 = vld [vmem:[%s1764 + $0x1d8] sm:$0xff]
      %v1825 = vld [vmem:[%s1764 + $0x1e0] sm:$0xff]
      %v1826 = vld [vmem:[%s1764 + $0x1e8] sm:$0xff]
      %v1827 = vld [vmem:[%s1764 + $0x1f0] sm:$0xff]
      %v1828 = vld [vmem:[%s1764 + $0x1f8] sm:$0xff]
      %v1829 = vld [vmem:[%s1764 + $0x200] sm:$0xff]
      %v1830 = vld [vmem:[%s1764 + $0x208] sm:$0xff]
      %v1831 = vld [vmem:[%s1764 + $0x210] sm:$0xff]
      %v1832 = vld [vmem:[%s1764 + $0x218] sm:$0xff]
      %v1833 = vld [vmem:[%s1764 + $0x220] sm:$0xff]
      %v1834 = vld [vmem:[%s1764 + $0x228] sm:$0xff]
      %v1835 = vld [vmem:[%s1764 + $0x230] sm:$0xff]
      %v1836 = vld [vmem:[%s1764 + $0x238] sm:$0xff]
      %v1837 = vld [vmem:[%s1764 + $0x240] sm:$0xff]
      %v1838 = vld [vmem:[%s1764 + $0x248] sm:$0xff]
      %v1839 = vld [vmem:[%s1764 + $0x250] sm:$0xff]
      %v1840 = vld [vmem:[%s1764 + $0x258] sm:$0xff]
      %v1841 = vld [vmem:[%s1764 + $0x260] sm:$0xff]
      %v1842 = vld [vmem:[%s1764 + $0x268] sm:$0xff]
      %v1843 = vld [vmem:[%s1764 + $0x270] sm:$0xff]
      %v1844 = vld [vmem:[%s1764 + $0x278] sm:$0xff]
      %v1845 = vld [vmem:[%s1764 + $0x280] sm:$0xff]
      %v1846 = vld [vmem:[%s1764 + $0x288] sm:$0xff]
      %v1847 = vld [vmem:[%s1764 + $0x290] sm:$0xff]
      %v1848 = vld [vmem:[%s1764 + $0x298] sm:$0xff]
      %v1849 = vld [vmem:[%s1764 + $0x2a0] sm:$0xff]
      %v1850 = vld [vmem:[%s1764 + $0x2a8] sm:$0xff]
      %v1851 = vld [vmem:[%s1764 + $0x2b0] sm:$0xff]
      %v1852 = vld [vmem:[%s1764 + $0x2b8] sm:$0xff]
      %v1853 = vld [vmem:[%s1764 + $0x2c0] sm:$0xff]
      %v1854 = vld [vmem:[%s1764 + $0x2c8] sm:$0xff]
      %v1855 = vld [vmem:[%s1764 + $0x2d0] sm:$0xff]
      %v1856 = vld [vmem:[%s1764 + $0x2d8] sm:$0xff]
      %v1857 = vld [vmem:[%s1764 + $0x2e0] sm:$0xff]
      %v1858 = vld [vmem:[%s1764 + $0x2e8] sm:$0xff]
      %v1859 = vld [vmem:[%s1764 + $0x2f0] sm:$0xff]
      %v1860 = vld [vmem:[%s1764 + $0x2f8] sm:$0xff]
      %v1861 = vld [vmem:[%s1764 + $0x300] sm:$0xff]
      %v1862 = vld [vmem:[%s1764 + $0x308] sm:$0xff]
      %v1863 = vld [vmem:[%s1764 + $0x310] sm:$0xff]
      %v1864 = vld [vmem:[%s1764 + $0x318] sm:$0xff]
      %v1865 = vld [vmem:[%s1764 + $0x320] sm:$0xff]
      %v1866 = vld [vmem:[%s1764 + $0x328] sm:$0xff]
      %v1867 = vld [vmem:[%s1764 + $0x330] sm:$0xff]
      %v1868 = vld [vmem:[%s1764 + $0x338] sm:$0xff]
      %v1869 = vld [vmem:[%s1764 + $0x340] sm:$0xff]
      %v1870 = vld [vmem:[%s1764 + $0x348] sm:$0xff]
      %v1871 = vld [vmem:[%s1764 + $0x350] sm:$0xff]
      %v1872 = vld [vmem:[%s1764 + $0x358] sm:$0xff]
      %v1873 = vld [vmem:[%s1764 + $0x360] sm:$0xff]
      %v1874 = vld [vmem:[%s1764 + $0x368] sm:$0xff]
      %v1875 = vld [vmem:[%s1764 + $0x370] sm:$0xff]
      %v1876 = vld [vmem:[%s1764 + $0x378] sm:$0xff]
      %v1877 = vld [vmem:[%s1764 + $0x380] sm:$0xff]
      %v1878 = vld [vmem:[%s1764 + $0x388] sm:$0xff]
      %v1879 = vld [vmem:[%s1764 + $0x390] sm:$0xff]
      %v1880 = vld [vmem:[%s1764 + $0x398] sm:$0xff]
      %v1881 = vld [vmem:[%s1764 + $0x3a0] sm:$0xff]
      %v1882 = vld [vmem:[%s1764 + $0x3a8] sm:$0xff]
      %v1883 = vld [vmem:[%s1764 + $0x3b0] sm:$0xff]
      %v1884 = vld [vmem:[%s1764 + $0x3b8] sm:$0xff]
      %v1885 = vld [vmem:[%s1764 + $0x3c0] sm:$0xff]
      %v1886 = vld [vmem:[%s1764 + $0x3c8] sm:$0xff]
      %v1887 = vld [vmem:[%s1764 + $0x3d0] sm:$0xff]
      %v1888 = vld [vmem:[%s1764 + $0x3d8] sm:$0xff]
      %v1889 = vld [vmem:[%s1764 + $0x3e0] sm:$0xff]
      %v1890 = vld [vmem:[%s1764 + $0x3e8] sm:$0xff]
      %v1891 = vld [vmem:[%s1764 + $0x3f0] sm:$0xff]
      %v1892 = vld [vmem:[%s1764 + $0x3f8] sm:$0xff]
      %v1893 = vld [vmem:[%s1764 + $0x400] sm:$0xff]
      %v1894 = vld [vmem:[%s1764 + $0x408] sm:$0xff]
      %v1895 = vld [vmem:[%s1764 + $0x410] sm:$0xff]
      %v1896 = vld [vmem:[%s1764 + $0x418] sm:$0xff]
      %v1897 = vld [vmem:[%s1764 + $0x420] sm:$0xff]
      %v1898 = vld [vmem:[%s1764 + $0x428] sm:$0xff]
      %v1899 = vld [vmem:[%s1764 + $0x430] sm:$0xff]
      %v1900 = vld [vmem:[%s1764 + $0x438] sm:$0xff]
      %v1901 = vld [vmem:[%s1764 + $0x440] sm:$0xff]
      %v1902 = vld [vmem:[%s1764 + $0x448] sm:$0xff]
      %v1903 = vld [vmem:[%s1764 + $0x450] sm:$0xff]
      %v1904 = vld [vmem:[%s1764 + $0x458] sm:$0xff]
      %v1905 = vld [vmem:[%s1764 + $0x460] sm:$0xff]
      %v1906 = vld [vmem:[%s1764 + $0x468] sm:$0xff]
      %v1907 = vld [vmem:[%s1764 + $0x470] sm:$0xff]
      %v1908 = vld [vmem:[%s1764 + $0x478] sm:$0xff]
      %vm1919 = vcmask 1043456
      %v1920 = vrot.slane %v1754, 4
      %v1921 = vrot.slane %v1759, 4
      %v1922 = vsel %vm1919, %v1920, %v1921
      %v1923 = vrot.slane %v1755, 4
      %v1924 = vrot.slane %v1760, 4
      %v1925 = vsel %vm1919, %v1923, %v1924
      %v1926 = vrot.slane %v1756, 4
      %v1927 = vrot.slane %v1761, 4
      %v1928 = vsel %vm1919, %v1926, %v1927
      %v1929 = vrot.slane %v1757, 4
      %v1930 = vrot.slane %v1762, 4
      %v1931 = vsel %vm1919, %v1929, %v1930
      %v1932 = vrot.slane %v1758, 4
      %v1933 = vrot.slane %v1763, 4
      %v1934 = vsel %vm1919, %v1932, %v1933
      %v1939 = vsel %vm518, %v1934, 0
      %1941 = vmatprep.subr.mxu0 %v1766
      %1942 = vmatpush1.msra.mxu0 %v1765
      %1943 = vmatprep.subr.mxu0 %v1768
      %1944 = vmatpush1.msra.mxu0 %v1767
      %1945 = vmatprep.subr.mxu0 %v1770
      %1946 = vmatpush1.msra.mxu0 %v1769
      %1947 = vmatprep.subr.mxu0 %v1772
      %1948 = vmatpush1.msra.mxu0 %v1771
      %1949 = vmatprep.subr.mxu0 %v1774
      %1950 = vmatpush1.msra.mxu0 %v1773
      %1951 = vmatprep.subr.mxu0 %v1776
      %1952 = vmatpush1.msra.mxu0 %v1775
      %1953 = vmatprep.subr.mxu0 %v1778
      %1954 = vmatpush1.msra.mxu0 %v1777
      %1955 = vmatprep.subr.mxu0 %v1780
      %1956 = vmatpush1.msra.mxu0 %v1779
      %1957 = vmatprep.subr.mxu0 %v1782
      %1958 = vmatpush1.msra.mxu0 %v1781
      %1959 = vmatprep.subr.mxu0 %v1784
      %1960 = vmatpush1.msra.mxu0 %v1783
      %1961 = vmatprep.subr.mxu0 %v1786
      %1962 = vmatpush1.msra.mxu0 %v1785
      %1963 = vmatprep.subr.mxu0 %v1788
      %1964 = vmatpush1.msra.mxu0 %v1787
      %1965 = vmatprep.subr.mxu0 %v1790
      %1966 = vmatpush1.msra.mxu0 %v1789
      %1967 = vmatprep.subr.mxu0 %v1792
      %1968 = vmatpush1.msra.mxu0 %v1791
      %1969 = vmatprep.subr.mxu0 %v1794
      %1970 = vmatpush1.msra.mxu0 %v1793
      %1971 = vmatprep.subr.mxu0 %v1796
      %1972 = vmatpush1.msra.mxu0 %v1795
      %1973 = vmatprep.subr.mxu0 %v1798
      %1974 = vmatpush1.msra.mxu0 %v1797
      %1975 = vmatprep.subr.mxu0 %v1800
      %1976 = vmatpush1.msra.mxu0 %v1799
      %1977 = vmatprep.subr.mxu0 %v1802
      %1978 = vmatpush1.msra.mxu0 %v1801
      %1979 = vmatprep.subr.mxu0 %v1804
      %1980 = vmatpush1.msra.mxu0 %v1803
      %1981 = vmatprep.subr.mxu0 %v1806
      %1982 = vmatpush1.msra.mxu0 %v1805
      %1983 = vmatprep.subr.mxu0 %v1808
      %1984 = vmatpush1.msra.mxu0 %v1807
      %1985 = vmatprep.subr.mxu0 %v1810
      %1986 = vmatpush1.msra.mxu0 %v1809
      %1987 = vmatprep.subr.mxu0 %v1812
      %1988 = vmatpush1.msra.mxu0 %v1811
      %1989 = vmatprep.subr.mxu0 %v1814
      %1990 = vmatpush1.msra.mxu0 %v1813
      %1991 = vmatprep.subr.mxu0 %v1816
      %1992 = vmatpush1.msra.mxu0 %v1815
      %1993 = vmatprep.subr.mxu0 %v1818
      %1994 = vmatpush1.msra.mxu0 %v1817
      %1995 = vmatprep.subr.mxu0 %v1820
      %1996 = vmatpush1.msra.mxu0 %v1819
      %1997 = vmatprep.subr.mxu0 %v1822
      %1998 = vmatpush1.msra.mxu0 %v1821
      %1999 = vmatprep.subr.mxu0 %v1824
      %2000 = vmatpush1.msra.mxu0 %v1823
      %2001 = vmatprep.subr.mxu0 %v1826
      %2002 = vmatpush1.msra.mxu0 %v1825
      %2003 = vmatprep.subr.mxu0 %v1828
      %2004 = vmatpush1.msra.mxu0 %v1827
      %2005 = vmatprep.mubr.f32.mxu0 %v1925
      %2006 = vmatmul.mubr.f32.gmra.mrb[0].mxu0 %v1922
      %v2007 = vpop.f32.mrb[0].mxu0
      %v2008 = vadd.f32 0.0, %v2007
      %v2009 = vpop.f32.mrb[0].mxu0
      %v2010 = vadd.f32 0.0, %v2009
      %2011 = vdwg.mxu0
      %2012 = vmatprep.subr.mxu0 %v1830
      %2013 = vmatpush1.msra.mxu0 %v1829
      %2014 = vmatprep.subr.mxu0 %v1832
      %2015 = vmatpush1.msra.mxu0 %v1831
      %2016 = vmatprep.subr.mxu0 %v1834
      %2017 = vmatpush1.msra.mxu0 %v1833
      %2018 = vmatprep.subr.mxu0 %v1836
      %2019 = vmatpush1.msra.mxu0 %v1835
      %2020 = vmatprep.subr.mxu0 %v1838
      %2021 = vmatpush1.msra.mxu0 %v1837
      %2022 = vmatprep.subr.mxu0 %v1840
      %2023 = vmatpush1.msra.mxu0 %v1839
      %2024 = vmatprep.subr.mxu0 %v1842
      %2025 = vmatpush1.msra.mxu0 %v1841
      %2026 = vmatprep.subr.mxu0 %v1844
      %2027 = vmatpush1.msra.mxu0 %v1843
      %2028 = vmatprep.subr.mxu0 %v1846
      %2029 = vmatpush1.msra.mxu0 %v1845
      %2030 = vmatprep.subr.mxu0 %v1848
      %2031 = vmatpush1.msra.mxu0 %v1847
      %2032 = vmatprep.subr.mxu0 %v1850
      %2033 = vmatpush1.msra.mxu0 %v1849
      %2034 = vmatprep.subr.mxu0 %v1852
      %2035 = vmatpush1.msra.mxu0 %v1851
      %2036 = vmatprep.subr.mxu0 %v1854
      %2037 = vmatpush1.msra.mxu0 %v1853
      %2038 = vmatprep.subr.mxu0 %v1856
      %2039 = vmatpush1.msra.mxu0 %v1855
      %2040 = vmatprep.subr.mxu0 %v1858
      %2041 = vmatpush1.msra.mxu0 %v1857
      %2042 = vmatprep.subr.mxu0 %v1860
      %2043 = vmatpush1.msra.mxu0 %v1859
      %2044 = vmatprep.subr.mxu0 %v1862
      %2045 = vmatpush1.msra.mxu0 %v1861
      %2046 = vmatprep.subr.mxu0 %v1864
      %2047 = vmatpush1.msra.mxu0 %v1863
      %2048 = vmatprep.subr.mxu0 %v1866
      %2049 = vmatpush1.msra.mxu0 %v1865
      %2050 = vmatprep.subr.mxu0 %v1868
      %2051 = vmatpush1.msra.mxu0 %v1867
      %2052 = vmatprep.subr.mxu0 %v1870
      %2053 = vmatpush1.msra.mxu0 %v1869
      %2054 = vmatprep.subr.mxu0 %v1872
      %2055 = vmatpush1.msra.mxu0 %v1871
      %2056 = vmatprep.subr.mxu0 %v1874
      %2057 = vmatpush1.msra.mxu0 %v1873
      %2058 = vmatprep.subr.mxu0 %v1876
      %2059 = vmatpush1.msra.mxu0 %v1875
      %2060 = vmatprep.subr.mxu0 %v1878
      %2061 = vmatpush1.msra.mxu0 %v1877
      %2062 = vmatprep.subr.mxu0 %v1880
      %2063 = vmatpush1.msra.mxu0 %v1879
      %2064 = vmatprep.subr.mxu0 %v1882
      %2065 = vmatpush1.msra.mxu0 %v1881
      %2066 = vmatprep.subr.mxu0 %v1884
      %2067 = vmatpush1.msra.mxu0 %v1883
      %2068 = vmatprep.subr.mxu0 %v1886
      %2069 = vmatpush1.msra.mxu0 %v1885
      %2070 = vmatprep.subr.mxu0 %v1888
      %2071 = vmatpush1.msra.mxu0 %v1887
      %2072 = vmatprep.subr.mxu0 %v1890
      %2073 = vmatpush1.msra.mxu0 %v1889
      %2074 = vmatprep.subr.mxu0 %v1892
      %2075 = vmatpush1.msra.mxu0 %v1891
      %2076 = vmatprep.mubr.f32.mxu0 %v1931
      %2077 = vmatmul.mubr.f32.gmra.mrb[0].mxu0 %v1928
      %v2078 = vpop.f32.mrb[0].mxu0
      %v2079 = vadd.f32 %v2008, %v2078
      %v2080 = vpop.f32.mrb[0].mxu0
      %v2081 = vadd.f32 %v2010, %v2080
      %2082 = vdwg.mxu0
      %2083 = vmatprep.subr.mxu0 %v1894
      %2084 = vmatpush1.msra.mxu0 %v1893
      %2085 = vmatprep.subr.mxu0 %v1896
      %2086 = vmatpush1.msra.mxu0 %v1895
      %2087 = vmatprep.subr.mxu0 %v1898
      %2088 = vmatpush1.msra.mxu0 %v1897
      %2089 = vmatprep.subr.mxu0 %v1900
      %2090 = vmatpush1.msra.mxu0 %v1899
      %2091 = vmatprep.subr.mxu0 %v1902
      %2092 = vmatpush1.msra.mxu0 %v1901
      %2093 = vmatprep.subr.mxu0 %v1904
      %2094 = vmatpush1.msra.mxu0 %v1903
      %2095 = vmatprep.subr.mxu0 %v1906
      %2096 = vmatpush1.msra.mxu0 %v1905
      %2097 = vmatprep.subr.mxu0 %v1908
      %2098 = vmatpush1.msra.mxu0 %v1907
      %2099 = vmatprep.subr.mxu0 0.0
      %2100 = vmatpush1.msra.mxu0 0.0
      %2101 = vmatprep.subr.mxu0 0.0
      %2102 = vmatpush1.msra.mxu0 0.0
      %2103 = vmatprep.subr.mxu0 0.0
      %2104 = vmatpush1.msra.mxu0 0.0
      %2105 = vmatprep.subr.mxu0 0.0
      %2106 = vmatpush1.msra.mxu0 0.0
      %2107 = vmatprep.subr.mxu0 0.0
      %2108 = vmatpush1.msra.mxu0 0.0
      %2109 = vmatprep.subr.mxu0 0.0
      %2110 = vmatpush1.msra.mxu0 0.0
      %2111 = vmatprep.subr.mxu0 0.0
      %2112 = vmatpush1.msra.mxu0 0.0
      %2113 = vmatprep.subr.mxu0 0.0
      %2114 = vmatpush1.msra.mxu0 0.0
      %2115 = vmatprep.subr.mxu0 0.0
      %2116 = vmatpush1.msra.mxu0 0.0
      %2117 = vmatprep.subr.mxu0 0.0
      %2118 = vmatpush1.msra.mxu0 0.0
      %2119 = vmatprep.subr.mxu0 0.0
      %2120 = vmatpush1.msra.mxu0 0.0
      %2121 = vmatprep.subr.mxu0 0.0
      %2122 = vmatpush1.msra.mxu0 0.0
      %2123 = vmatprep.subr.mxu0 0.0
      %2124 = vmatpush1.msra.mxu0 0.0
      %2125 = vmatprep.subr.mxu0 0.0
      %2126 = vmatpush1.msra.mxu0 0.0
      %2127 = vmatprep.subr.mxu0 0.0
      %2128 = vmatpush1.msra.mxu0 0.0
      %2129 = vmatprep.subr.mxu0 0.0
      %2130 = vmatpush1.msra.mxu0 0.0
      %2131 = vmatprep.subr.mxu0 0.0
      %2132 = vmatpush1.msra.mxu0 0.0
      %2133 = vmatprep.subr.mxu0 0.0
      %2134 = vmatpush1.msra.mxu0 0.0
      %2135 = vmatprep.subr.mxu0 0.0
      %2136 = vmatpush1.msra.mxu0 0.0
      %2137 = vmatprep.subr.mxu0 0.0
      %2138 = vmatpush1.msra.mxu0 0.0
      %2139 = vmatprep.subr.mxu0 0.0
      %2140 = vmatpush1.msra.mxu0 0.0
      %2141 = vmatprep.subr.mxu0 0.0
      %2142 = vmatpush1.msra.mxu0 0.0
      %2143 = vmatprep.subr.mxu0 0.0
      %2144 = vmatpush1.msra.mxu0 0.0
      %2145 = vmatprep.subr.mxu0 0.0
      %2146 = vmatpush1.msra.mxu0 0.0
      %2147 = vmatprep.mubr.f32.mxu0 0.0
      %2148 = vmatmul.mubr.f32.gmra.mrb[0].mxu0 %v1939
      %v2149 = vpop.f32.mrb[0].mxu0
      %v2150 = vadd.f32 %v2079, %v2149
      %v2151 = vpop.f32.mrb[0].mxu0
      %v2152 = vadd.f32 %v2081, %v2151
      %2153 = vdwg.mxu0
      %v2154 = vadd.f32 %v1752, %v2150
      %v2155 = vadd.f32 %v1753, %v2152
      %2156 = vst [vmem:[%s178] sm:$0xff] %v2154
      %2157 = vst [vmem:[%s178 + $0x8] sm:$0xff] %v2155
      %v2158 = vrot.slane %v2154, 4
      %v2159 = vadd.f32 %v2154, %v2158
      %v2160 = vrot.slane %v2159, 2
      %v2161 = vadd.f32 %v2159, %v2160
      %v2162 = vrot.slane %v2161, 1
      %v2163 = vadd.f32 %v2161, %v2162
      %v2164 = vrot.slane %v2155, 4
      %v2165 = vadd.f32 %v2155, %v2164
      %v2166 = vrot.slane %v2165, 2
      %v2167 = vadd.f32 %v2165, %v2166
      %v2168 = vrot.slane %v2167, 1
      %v2169 = vadd.f32 %v2167, %v2168
      %v2170 = vmul.f32 %v2154, %v2154
      %v2171 = vmul.f32 %v2155, %v2155
      %v2172 = vrot.slane %v2170, 4
      %v2173 = vadd.f32 %v2170, %v2172
      %v2174 = vrot.slane %v2173, 2
      %v2175 = vadd.f32 %v2173, %v2174
      %v2176 = vrot.slane %v2175, 1
      %v2177 = vadd.f32 %v2175, %v2176
      %v2178 = vrot.slane %v2171, 4
      %v2179 = vadd.f32 %v2171, %v2178
      %v2180 = vrot.slane %v2179, 2
      %v2181 = vadd.f32 %v2179, %v2180
      %v2182 = vrot.slane %v2181, 1
      %v2183 = vadd.f32 %v2181, %v2182
      %vm2184 = vcmask 1040384
      %v2185 = vsel %vm2184, %v2163, %v2177
      %v2186 = vsel %vm2184, %v2169, %v2183
      %v2189 = vcombine.low %v2185, %v2186
      %v2191 = vunpack.c.l.s4 1983009808
      %v2192 = vunpack.c.0.s8 %v2191
      %v2193 = vlaneseq
      %v2194 = vshrl.u32 %v2193, 7
      %v2195 = vsub.s32 %v2192, %v2194
      %v2196 = vrot.slane %v2189, %v2195
      %2198 = vst [vmem:[%s183] sm:$0xf] %v2196
      %p2199 = scmp.lt.s32.totalorder %s15, 1
      %s2200 = scalar_select %p2199, %s15, 1
      %s2201 = smul.addr %s2200, 2
      %s2202 = smul.addr %s2201, 8
      %s2203 = scalar_lea.vmem %s2, %s2202
      %p2204 = scmp.lt.s32.totalorder %s15, 1
      %s2205 = scalar_select %p2204, %s15, 1
      %s2206 = smul.addr %s2205, 2
      %s2207 = smul.addr %s2206, 2
      %s2208 = scalar_lea.vmem %s3, %s2207
      // Predicated region
      $region29: #{luconv_forward.2} parent=27 // pred_check
        %p2209 = pneg %p80
      $region30: #{luconv_forward.2} parent=27 // pred_check_branch
        %2211 = sbr.rel (%p2209) target = $region32
      $region31: #{luconv_forward.2} parent=27 // pred_region
        _
      $region32: #{luconv_forward.2} parent=27 // pred_fallthru
        _
      // Predicated region
      $region33: #{luconv_forward.2} parent=27 // pred_check
        %p2212 = pneg %p106
      $region34: #{luconv_forward.2} parent=27 // pred_check_branch
        %2214 = sbr.rel (%p2212) target = $region36
      $region35: #{luconv_forward.2} parent=27 // pred_region
        _
      $region36: #{luconv_forward.2} parent=27 // pred_fallthru
        _
    $region28: #{luconv_forward.2} parent=5 // pred_fallthru
      _
    %p2215 = scmp.le.s32.totalorder 2, %s10
    // Predicated region
    $region37: #{luconv_forward.2} parent=5 // pred_check
      %p2216 = pneg %p2215
    $region38: #{luconv_forward.2} parent=5 // pred_check_branch
      %2218 = sbr.rel (%p2216) target = $region40
    $region39: #{luconv_forward.2} parent=5 // pred_region
      %s2219 = ssub.s32 %s10, 2
      // Predicated region
      $region41: #{luconv_forward.2} parent=39 // pred_check
        %p2220 = pneg %p86
      $region42: #{luconv_forward.2} parent=39 // pred_check_branch
        %2222 = sbr.rel (%p2220) target = $region44
      $region43: #{luconv_forward.2} parent=39 // pred_region
        %p2223 = scmp.lt.s32.totalorder %s16, 1
        %s2224 = scalar_select %p2223, %s16, 1
        %s2225 = smul.addr %s2224, 2
        %s2226 = smul.addr %s2225, 8
        %s2227 = scalar_lea.vmem %s2, %s2226
      $region44: #{luconv_forward.2} parent=39 // pred_fallthru
        _
      // Predicated region
      $region45: #{luconv_forward.2} parent=39 // pred_check
        %p2228 = pneg %p112
      $region46: #{luconv_forward.2} parent=39 // pred_check_branch
        %2230 = sbr.rel (%p2228) target = $region48
      $region47: #{luconv_forward.2} parent=39 // pred_region
        %p2231 = scmp.lt.s32.totalorder %s16, 1
        %s2232 = scalar_select %p2231, %s16, 1
        %s2233 = smul.addr %s2232, 2
        %s2234 = smul.addr %s2233, 2
        %s2235 = scalar_lea.vmem %s3, %s2234
      $region48: #{luconv_forward.2} parent=39 // pred_fallthru
        _
    $region40: #{luconv_forward.2} parent=5 // pred_fallthru
      _
  $region6: #{luconv_forward.2} parent=0 // loop_footer
    %s14 = sadd.s32 1, %s10
  $region7: #{luconv_forward.2} parent=0 // loop_footer_branch
    %9 = sbr.rel target = $region3
  $region8: #{luconv_forward.2} parent=0 // loop_exit
    _

</llo_original>
